<compile_context>
chip_gen: v5e
topology: v5e:2x2
jax: 0.10.0
libtpu: 0.0.40
codegen_flags: <defaults>
</compile_context>

<pallas_src>
import functools

import jax
import jax.numpy as jnp
from jax import lax
from jax.experimental import pallas as pl
from jax.experimental.pallas import tpu as pltpu

# ----- small stand-in dimensions (scaled down from the original module) -----
B = 2            # batch
C_IMG = 128      # image feature channels   (stand-in for ResNet 2048)
POOL = 4         # spatial side of feature map (stand-in for 10)
IMG_FTRS = 128   # ImageEmbedding fc output  (stand-in for 1000)
VOCAB = 50       # vocab_size
E_WORD = 32      # word_emb_size             (stand-in for 300)
H_QNS = 128      # question_ftrs             (stand-in for 1024)
T_SEQ = 8        # question length
D_HID = 128      # classifier hidden         (stand-in for 1024)
N_CLS = 256      # classifier output         (stand-in for 3000)


# ------------------------------- fused kernel -------------------------------

def fused_concat_net_kernel(
    x_img_ref,    # (Bp, H*W, C)              bf16  channels-last image feature map
    img_w_ref,    # (C, IMG_FTRS)             bf16
    img_b_ref,    # (1, IMG_FTRS)             f32
    xq_ref,       # (T*Bp, E)                 f32   time-major word embeddings, flattened
    wih_ref,      # (E, 4H)                   bf16  gate order (i, f, o, g)
    whh_ref,      # (H, 4H)                   bf16  gate order (i, f, o, g)
    lstm_b_ref,   # (1, 4H)                   f32   (= b_ih + b_hh), gate order (i, f, o, g)
    w1_ref,       # (IMG_FTRS + H_QNS, D_HID) bf16  unsplit classifier weight
    b1_ref,       # (1, D_HID)                f32
    w2_ref,       # (D_HID, N_OUT)            bf16  N_OUT = N_CLS padded to 128 multiple
    b2_ref,       # (1, N_OUT)                f32
    o_ref,        # (Bp, N_OUT)               f32
    *, b_actual, bp, t_seq, h_qns,
):
    bf16 = jnp.bfloat16
    f32 = jnp.float32

    # ---------------- ImageEmbedding.forward (post-backbone part) ----------
    # bf16 DMA from the wrapper; upcast so ALL elementwise math is f32 (v5e-safe).
    x = x_img_ref[...].astype(f32)                            # (Bp, HW, C)
    # F.normalize(p=2, dim=1): L2-normalize over channels.
    # rsqrt(max(sumsq, eps^2)) == 1 / max(sqrt(sumsq), eps)   (PyTorch clamp semantics)
    sumsq = jnp.sum(x * x, axis=-1, keepdims=True)
    xn = x * lax.rsqrt(jnp.maximum(sumsq, 1e-24))
    # AvgPool2d(kernel_size=POOL, stride=1, padding=0) over the full spatial extent
    pooled = jnp.mean(xn, axis=1)                             # (Bp, C)
    img_embed = (jnp.dot(pooled.astype(bf16), img_w_ref[...],
                         preferred_element_type=f32)
                 + img_b_ref[...])                            # (Bp, IMG_FTRS) f32

    # ---------------- QnsEmbedding.forward (tanh -> LSTM, take h_n) ---------
    # Hoisted input projection: tanh(x) for all T, then one (T*Bp, E)x(E, 4H)
    # matmul; only h @ W_hh remains on the sequential recurrence path.
    xq = jnp.tanh(xq_ref[...])                                # (T*Bp, E) f32
    gx_all = (jnp.dot(xq.astype(bf16), wih_ref[...],
                      preferred_element_type=f32)
              + lstm_b_ref[...])                              # (T*Bp, 4H) f32
    whh = whh_ref[...]                                        # (H, 4H) bf16

    h = jnp.zeros((bp, h_qns), f32)                           # init_cache(): zeros
    c = jnp.zeros((bp, h_qns), f32)
    for t in range(t_seq):                                    # static trip count: full unroll
        gates = (gx_all[t * bp:(t + 1) * bp, :]
                 + jnp.dot(h.astype(bf16), whh,
                           preferred_element_type=f32))       # (Bp, 4H)
        # gate columns pre-permuted to (i, f, o, g): one sigmoid over a
        # contiguous (Bp, 3H) slab, one tanh over the last (Bp, H) slab.
        ifo = jax.nn.sigmoid(gates[:, :3 * h_qns])
        g = jnp.tanh(gates[:, 3 * h_qns:])
        i_g = ifo[:, 0 * h_qns:1 * h_qns]
        f_g = ifo[:, 1 * h_qns:2 * h_qns]
        o_g = ifo[:, 2 * h_qns:3 * h_qns]
        c = f_g * c + i_g * g
        h = o_g * jnp.tanh(c)                                 # h_n after last step

    # ---------------- classifier: Dropout -> Linear -> ReLU -> Linear -> Softmax(dim=0)
    # TODO(synk): nn.Dropout(0.5) treated as identity (eval semantics).
    # Single fused dot: concat([img_embed, h], lane axis) @ w1 (unsplit).
    feat = jnp.concatenate([img_embed.astype(bf16), h.astype(bf16)],
                           axis=1)                            # (Bp, IMG_FTRS + H_QNS)
    hidden = jnp.maximum(
        jnp.dot(feat, w1_ref[...], preferred_element_type=f32) + b1_ref[...],
        0.0)                                                  # (Bp, D_HID)
    logits = (jnp.dot(hidden.astype(bf16), w2_ref[...],
                      preferred_element_type=f32)
              + b2_ref[...])                                  # (Bp, N_OUT)

    # nn.Softmax(dim=0): softmax over the BATCH axis, exactly as written.
    # Mask padded batch rows so they do not contribute to the batch reduction.
    # NOTE: the -1e30 mask constant must stay f32 (do not lower to bf16).
    row = lax.broadcasted_iota(jnp.int32, logits.shape, 0)
    logits = jnp.where(row < b_actual, logits, jnp.float32(-1e30))
    m = jnp.max(logits, axis=0, keepdims=True)
    e = jnp.exp(logits - m)
    # approx reciprocal on EUP: rows sum to 1 within ~1e-4; use exact divide if
    # strict parity with PyTorch softmax is required.
    o_ref[...] = e * pl.reciprocal(jnp.sum(e, axis=0, keepdims=True), approx=True)


# ------------------------------- wrapper ------------------------------------

def _in_spec(shape):
    # Whole-array block; single-buffered (grid=(1,) -> nothing to pipeline,
    # default double-buffering would only double the VMEM footprint).
    nd = len(shape)
    return pl.BlockSpec(shape, lambda *_: (0,) * nd,
                        pipeline_mode=pl.Buffered(1))


def _reorder_gates(p):
    # PyTorch LSTM gate order along the 4H axis is (i, f, g, o).
    # Permute to (i, f, o, g) so the kernel applies one sigmoid to a contiguous
    # 3H slab. Pure wrapper-side layout plumbing; numerics unchanged.
    i, f, g, o = jnp.split(p, 4, axis=-1)
    return jnp.concatenate([i, f, o, g], axis=-1)


def concat_net_forward(image, questions, params):
    # image: (B, C, H, W) NCHW as in PyTorch; questions: (B, T) int32 token ids
    Bq, C, Hh, Ww = image.shape
    T = questions.shape[1]
    Bp = max(8, ((Bq + 7) // 8) * 8)          # pad batch to f32 sublane width
    bf16 = jnp.bfloat16

    # layout: NCHW -> (Bp, H*W, C) channels-last, zero-padded batch rows.
    # Shipped bf16 (largest input DMA); upcast to f32 inside the kernel.
    x = jnp.transpose(image, (0, 2, 3, 1)).reshape(Bq, Hh * Ww, C)
    x = jnp.pad(x, ((0, Bp - Bq), (0, 0), (0, 0))).astype(bf16)

    # nn.Embedding lookup (glue, plain JAX, fuses with the pad/transpose under
    # jit), then time-major flattened (T*Bp, E) for the hoisted input projection.
    embeds = jnp.take(params["emb"], questions, axis=0)       # (B, T, E)
    embeds = jnp.pad(embeds, ((0, Bp - Bq), (0, 0), (0, 0)))  # (Bp, T, E)
    xq = jnp.transpose(embeds, (1, 0, 2)).reshape(T * Bp, E_WORD)

    # LSTM params: permute gate columns (i,f,g,o) -> (i,f,o,g).
    wih = _reorder_gates(params["wih"]).astype(bf16)
    whh = _reorder_gates(params["whh"]).astype(bf16)
    lstm_b = _reorder_gates(params["lstm_b"])

    # Pad classifier output dim to a lane-dense multiple of 128 (no-op at 256).
    n_cls = params["w2"].shape[1]
    n_out = ((n_cls + 127) // 128) * 128
    w2 = jnp.pad(params["w2"], ((0, 0), (0, n_out - n_cls))).astype(bf16)
    b2 = jnp.pad(params["b2"], ((0, 0), (0, n_out - n_cls)))

    kernel = functools.partial(
        fused_concat_net_kernel, b_actual=Bq, bp=Bp, t_seq=T, h_qns=H_QNS)

    inputs = (
        x,
        params["img_w"].astype(bf16), params["img_b"],
        xq,
        wih, whh, lstm_b,
        params["w1"].astype(bf16), params["b1"],
        w2, b2,
    )

    out_padded = pl.pallas_call(
        kernel,
        grid=(1,),
        in_specs=[_in_spec(a.shape) for a in inputs],
        # Output is tiny (Bp x n_out f32); default buffering is fine.
        out_specs=pl.BlockSpec((Bp, n_out), lambda *_: (0, 0)),
        out_shape=jax.ShapeDtypeStruct((Bp, n_out), jnp.float32),
        # At real scale: raise vmem_limit_bytes (v5e) / tile N_CLS on a
        # "parallel" grid axis (v7x). Not needed at these toy shapes.
        compiler_params=pltpu.CompilerParams(
            dimension_semantics=("arbitrary",)),
    )(*inputs)

    return out_padded[:Bq, :n_cls]            # drop padded batch rows / classes


def init_params(key):
    ks = jax.random.split(key, 9)
    s = 0.05
    return dict(
        img_w=s * jax.random.normal(ks[0], (C_IMG, IMG_FTRS), jnp.float32),
        img_b=s * jax.random.normal(ks[1], (1, IMG_FTRS), jnp.float32),
        emb=s * jax.random.normal(ks[2], (VOCAB, E_WORD), jnp.float32),
        # LSTM params stored in PyTorch gate order (i, f, g, o); the wrapper permutes.
        wih=s * jax.random.normal(ks[3], (E_WORD, 4 * H_QNS), jnp.float32),
        whh=s * jax.random.normal(ks[4], (H_QNS, 4 * H_QNS), jnp.float32),
        lstm_b=s * jax.random.normal(ks[5], (1, 4 * H_QNS), jnp.float32),
        w1=s * jax.random.normal(ks[6], (IMG_FTRS + H_QNS, D_HID), jnp.float32),
        b1=s * jax.random.normal(ks[7], (1, D_HID), jnp.float32),
        w2=s * jax.random.normal(ks[8], (D_HID, N_CLS), jnp.float32),
        b2=jnp.zeros((1, N_CLS), jnp.float32),
    )


if __name__ == "__main__":
    key = jax.random.PRNGKey(0)
    k_img, k_q, k_p = jax.random.split(key, 3)
    # image feature map in PyTorch NCHW layout (post-ResNet backbone stand-in)
    image = jax.random.normal(k_img, (B, C_IMG, POOL, POOL), jnp.float32)
    questions = jax.random.randint(k_q, (B, T_SEQ), 0, VOCAB, dtype=jnp.int32)
    params = init_params(k_p)

    out = jax.jit(concat_net_forward)(image, questions, params)
    out = jax.block_until_ready(out)
    assert out.shape == (B, N_CLS)
    assert bool(jnp.all(jnp.isfinite(out)))
    print("KERNEL_OK")
</pallas_src>

<mosaic_0001>
module attributes {stable_mosaic.version = 11 : i64} {
  func.func @fused_concat_net_kernel(%arg0: i32, %arg1: memref<8x16x128xbf16, #tpu.memory_space<vmem>>, %arg2: memref<128x128xbf16, #tpu.memory_space<vmem>>, %arg3: memref<1x128xf32, #tpu.memory_space<vmem>>, %arg4: memref<64x32xf32, #tpu.memory_space<vmem>>, %arg5: memref<32x512xbf16, #tpu.memory_space<vmem>>, %arg6: memref<128x512xbf16, #tpu.memory_space<vmem>>, %arg7: memref<1x512xf32, #tpu.memory_space<vmem>>, %arg8: memref<256x128xbf16, #tpu.memory_space<vmem>>, %arg9: memref<1x128xf32, #tpu.memory_space<vmem>>, %arg10: memref<128x256xbf16, #tpu.memory_space<vmem>>, %arg11: memref<1x256xf32, #tpu.memory_space<vmem>>, %arg12: memref<8x256xf32, #tpu.memory_space<vmem>>) attributes {dimension_semantics = [#tpu.dimension_semantics<arbitrary>], iteration_bounds = array<i64: 1>, scalar_prefetch = 0 : i64, scratch_operands = 0 : i64, tpu.core_type = #tpu.core_type<tc>, window_params = [{pipeline_mode = #tpu.pipeline_mode<synchronous>, transform_indices = @transform_0, window_bounds = array<i64: 8, 16, 128>}, {pipeline_mode = #tpu.pipeline_mode<synchronous>, transform_indices = @transform_1, window_bounds = array<i64: 128, 128>}, {pipeline_mode = #tpu.pipeline_mode<synchronous>, transform_indices = @transform_2, window_bounds = array<i64: 1, 128>}, {pipeline_mode = #tpu.pipeline_mode<synchronous>, transform_indices = @transform_3, window_bounds = array<i64: 64, 32>}, {pipeline_mode = #tpu.pipeline_mode<synchronous>, transform_indices = @transform_4, window_bounds = array<i64: 32, 512>}, {pipeline_mode = #tpu.pipeline_mode<synchronous>, transform_indices = @transform_5, window_bounds = array<i64: 128, 512>}, {pipeline_mode = #tpu.pipeline_mode<synchronous>, transform_indices = @transform_6, window_bounds = array<i64: 1, 512>}, {pipeline_mode = #tpu.pipeline_mode<synchronous>, transform_indices = @transform_7, window_bounds = array<i64: 256, 128>}, {pipeline_mode = #tpu.pipeline_mode<synchronous>, transform_indices = @transform_8, window_bounds = array<i64: 1, 128>}, {pipeline_mode = #tpu.pipeline_mode<synchronous>, transform_indices = @transform_9, window_bounds = array<i64: 128, 256>}, {pipeline_mode = #tpu.pipeline_mode<synchronous>, transform_indices = @transform_10, window_bounds = array<i64: 1, 256>}, {pipeline_mode = #tpu.pipeline_mode<synchronous>, transform_indices = @transform_11, window_bounds = array<i64: 8, 256>}]} {
    %c0 = arith.constant 0 : index
    %c0_0 = arith.constant 0 : index
    %c0_1 = arith.constant 0 : index
    %0 = vector.load %arg1[%c0, %c0_0, %c0_1] : memref<8x16x128xbf16, #tpu.memory_space<vmem>>, vector<8x16x128xbf16>
    %1 = arith.extf %0 : vector<8x16x128xbf16> to vector<8x16x128xf32>
    %2 = arith.mulf %1, %1 : vector<8x16x128xf32>
    %cst = arith.constant dense<0.000000e+00> : vector<8x16xf32>
    %3 = vector.multi_reduction <add>, %2, %cst [2] : vector<8x16x128xf32> to vector<8x16xf32>
    %4 = vector.shape_cast %3 : vector<8x16xf32> to vector<8x16x1xf32>
    %cst_2 = arith.constant 1.000000e-24 : f32
    %5 = vector.broadcast %cst_2 : f32 to vector<8x16x1xf32>
    %6 = arith.maximumf %4, %5 : vector<8x16x1xf32>
    %7 = math.rsqrt %6 : vector<8x16x1xf32>
    %8 = vector.broadcast %7 : vector<8x16x1xf32> to vector<8x16x128xf32>
    %9 = arith.mulf %1, %8 : vector<8x16x128xf32>
    %cst_3 = arith.constant dense<0.000000e+00> : vector<8x128xf32>
    %10 = vector.multi_reduction <add>, %9, %cst_3 [1] : vector<8x16x128xf32> to vector<8x128xf32>
    %cst_4 = arith.constant 1.600000e+01 : f32
    %11 = vector.broadcast %cst_4 : f32 to vector<8x128xf32>
    %12 = arith.divf %10, %11 : vector<8x128xf32>
    %13 = arith.truncf %12 : vector<8x128xf32> to vector<8x128xbf16>
    %c0_5 = arith.constant 0 : index
    %c0_6 = arith.constant 0 : index
    %14 = vector.load %arg2[%c0_5, %c0_6] : memref<128x128xbf16, #tpu.memory_space<vmem>>, vector<128x128xbf16>
    %cst_7 = arith.constant dense<0.000000e+00> : vector<8x128xf32>
    %15 = tpu.matmul %13, %14, %cst_7 {dimension_numbers = #tpu.dot_dimension_numbers<[1], [0], [0], [1], [0, 0, 1, 1], [], []>} : vector<8x128xbf16>, vector<128x128xbf16>, vector<8x128xf32> -> vector<8x128xf32>
    %c0_8 = arith.constant 0 : index
    %c0_9 = arith.constant 0 : index
    %16 = vector.load %arg3[%c0_8, %c0_9] : memref<1x128xf32, #tpu.memory_space<vmem>>, vector<1x128xf32>
    %17 = vector.broadcast %16 : vector<1x128xf32> to vector<8x128xf32>
    %18 = arith.addf %15, %17 : vector<8x128xf32>
    %c0_10 = arith.constant 0 : index
    %c0_11 = arith.constant 0 : index
    %19 = vector.load %arg4[%c0_10, %c0_11] : memref<64x32xf32, #tpu.memory_space<vmem>>, vector<64x32xf32>
    %20 = math.tanh %19 : vector<64x32xf32>
    %21 = arith.truncf %20 : vector<64x32xf32> to vector<64x32xbf16>
    %c0_12 = arith.constant 0 : index
    %c0_13 = arith.constant 0 : index
    %22 = vector.load %arg5[%c0_12, %c0_13] : memref<32x512xbf16, #tpu.memory_space<vmem>>, vector<32x512xbf16>
    %cst_14 = arith.constant dense<0.000000e+00> : vector<64x512xf32>
    %23 = tpu.matmul %21, %22, %cst_14 {dimension_numbers = #tpu.dot_dimension_numbers<[1], [0], [0], [1], [0, 0, 1, 1], [], []>} : vector<64x32xbf16>, vector<32x512xbf16>, vector<64x512xf32> -> vector<64x512xf32>
    %c0_15 = arith.constant 0 : index
    %c0_16 = arith.constant 0 : index
    %24 = vector.load %arg7[%c0_15, %c0_16] : memref<1x512xf32, #tpu.memory_space<vmem>>, vector<1x512xf32>
    %25 = vector.broadcast %24 : vector<1x512xf32> to vector<64x512xf32>
    %26 = arith.addf %23, %25 : vector<64x512xf32>
    %c0_17 = arith.constant 0 : index
    %c0_18 = arith.constant 0 : index
    %27 = vector.load %arg6[%c0_17, %c0_18] : memref<128x512xbf16, #tpu.memory_space<vmem>>, vector<128x512xbf16>
    %cst_19 = arith.constant 0.000000e+00 : f32
    %28 = vector.broadcast %cst_19 : f32 to vector<8x128xf32>
    %cst_20 = arith.constant 0.000000e+00 : f32
    %29 = vector.broadcast %cst_20 : f32 to vector<8x128xf32>
    %30 = vector.extract_strided_slice %26 {offsets = [0, 0], sizes = [8, 512], strides = [1, 1]} : vector<64x512xf32> to vector<8x512xf32>
    %31 = arith.truncf %28 : vector<8x128xf32> to vector<8x128xbf16>
    %cst_21 = arith.constant dense<0.000000e+00> : vector<8x512xf32>
    %32 = tpu.matmul %31, %27, %cst_21 {dimension_numbers = #tpu.dot_dimension_numbers<[1], [0], [0], [1], [0, 0, 1, 1], [], []>} : vector<8x128xbf16>, vector<128x512xbf16>, vector<8x512xf32> -> vector<8x512xf32>
    %33 = arith.addf %30, %32 : vector<8x512xf32>
    %34 = vector.extract_strided_slice %33 {offsets = [0, 0], sizes = [8, 384], strides = [1, 1]} : vector<8x512xf32> to vector<8x384xf32>
    %35 = arith.negf %34 : vector<8x384xf32>
    %36 = math.exp %35 : vector<8x384xf32>
    %cst_22 = arith.constant 1.000000e+00 : f32
    %37 = vector.broadcast %cst_22 : f32 to vector<8x384xf32>
    %38 = arith.addf %37, %36 : vector<8x384xf32>
    %39 = arith.divf %37, %38 : vector<8x384xf32>
    %40 = vector.extract_strided_slice %33 {offsets = [0, 384], sizes = [8, 128], strides = [1, 1]} : vector<8x512xf32> to vector<8x128xf32>
    %41 = math.tanh %40 : vector<8x128xf32>
    %42 = vector.extract_strided_slice %39 {offsets = [0, 0], sizes = [8, 128], strides = [1, 1]} : vector<8x384xf32> to vector<8x128xf32>
    %43 = vector.extract_strided_slice %39 {offsets = [0, 128], sizes = [8, 128], strides = [1, 1]} : vector<8x384xf32> to vector<8x128xf32>
    %44 = vector.extract_strided_slice %39 {offsets = [0, 256], sizes = [8, 128], strides = [1, 1]} : vector<8x384xf32> to vector<8x128xf32>
    %45 = arith.mulf %43, %29 : vector<8x128xf32>
    %46 = arith.mulf %42, %41 : vector<8x128xf32>
    %47 = arith.addf %45, %46 : vector<8x128xf32>
    %48 = math.tanh %47 : vector<8x128xf32>
    %49 = arith.mulf %44, %48 : vector<8x128xf32>
    %50 = vector.extract_strided_slice %26 {offsets = [8, 0], sizes = [8, 512], strides = [1, 1]} : vector<64x512xf32> to vector<8x512xf32>
    %51 = arith.truncf %49 : vector<8x128xf32> to vector<8x128xbf16>
    %cst_23 = arith.constant dense<0.000000e+00> : vector<8x512xf32>
    %52 = tpu.matmul %51, %27, %cst_23 {dimension_numbers = #tpu.dot_dimension_numbers<[1], [0], [0], [1], [0, 0, 1, 1], [], []>} : vector<8x128xbf16>, vector<128x512xbf16>, vector<8x512xf32> -> vector<8x512xf32>
    %53 = arith.addf %50, %52 : vector<8x512xf32>
    %54 = vector.extract_strided_slice %53 {offsets = [0, 0], sizes = [8, 384], strides = [1, 1]} : vector<8x512xf32> to vector<8x384xf32>
    %55 = arith.negf %54 : vector<8x384xf32>
    %56 = math.exp %55 : vector<8x384xf32>
    %cst_24 = arith.constant 1.000000e+00 : f32
    %57 = vector.broadcast %cst_24 : f32 to vector<8x384xf32>
    %58 = arith.addf %57, %56 : vector<8x384xf32>
    %59 = arith.divf %57, %58 : vector<8x384xf32>
    %60 = vector.extract_strided_slice %53 {offsets = [0, 384], sizes = [8, 128], strides = [1, 1]} : vector<8x512xf32> to vector<8x128xf32>
    %61 = math.tanh %60 : vector<8x128xf32>
    %62 = vector.extract_strided_slice %59 {offsets = [0, 0], sizes = [8, 128], strides = [1, 1]} : vector<8x384xf32> to vector<8x128xf32>
    %63 = vector.extract_strided_slice %59 {offsets = [0, 128], sizes = [8, 128], strides = [1, 1]} : vector<8x384xf32> to vector<8x128xf32>
    %64 = vector.extract_strided_slice %59 {offsets = [0, 256], sizes = [8, 128], strides = [1, 1]} : vector<8x384xf32> to vector<8x128xf32>
    %65 = arith.mulf %63, %47 : vector<8x128xf32>
    %66 = arith.mulf %62, %61 : vector<8x128xf32>
    %67 = arith.addf %65, %66 : vector<8x128xf32>
    %68 = math.tanh %67 : vector<8x128xf32>
    %69 = arith.mulf %64, %68 : vector<8x128xf32>
    %70 = vector.extract_strided_slice %26 {offsets = [16, 0], sizes = [8, 512], strides = [1, 1]} : vector<64x512xf32> to vector<8x512xf32>
    %71 = arith.truncf %69 : vector<8x128xf32> to vector<8x128xbf16>
    %cst_25 = arith.constant dense<0.000000e+00> : vector<8x512xf32>
    %72 = tpu.matmul %71, %27, %cst_25 {dimension_numbers = #tpu.dot_dimension_numbers<[1], [0], [0], [1], [0, 0, 1, 1], [], []>} : vector<8x128xbf16>, vector<128x512xbf16>, vector<8x512xf32> -> vector<8x512xf32>
    %73 = arith.addf %70, %72 : vector<8x512xf32>
    %74 = vector.extract_strided_slice %73 {offsets = [0, 0], sizes = [8, 384], strides = [1, 1]} : vector<8x512xf32> to vector<8x384xf32>
    %75 = arith.negf %74 : vector<8x384xf32>
    %76 = math.exp %75 : vector<8x384xf32>
    %cst_26 = arith.constant 1.000000e+00 : f32
    %77 = vector.broadcast %cst_26 : f32 to vector<8x384xf32>
    %78 = arith.addf %77, %76 : vector<8x384xf32>
    %79 = arith.divf %77, %78 : vector<8x384xf32>
    %80 = vector.extract_strided_slice %73 {offsets = [0, 384], sizes = [8, 128], strides = [1, 1]} : vector<8x512xf32> to vector<8x128xf32>
    %81 = math.tanh %80 : vector<8x128xf32>
    %82 = vector.extract_strided_slice %79 {offsets = [0, 0], sizes = [8, 128], strides = [1, 1]} : vector<8x384xf32> to vector<8x128xf32>
    %83 = vector.extract_strided_slice %79 {offsets = [0, 128], sizes = [8, 128], strides = [1, 1]} : vector<8x384xf32> to vector<8x128xf32>
    %84 = vector.extract_strided_slice %79 {offsets = [0, 256], sizes = [8, 128], strides = [1, 1]} : vector<8x384xf32> to vector<8x128xf32>
    %85 = arith.mulf %83, %67 : vector<8x128xf32>
    %86 = arith.mulf %82, %81 : vector<8x128xf32>
    %87 = arith.addf %85, %86 : vector<8x128xf32>
    %88 = math.tanh %87 : vector<8x128xf32>
    %89 = arith.mulf %84, %88 : vector<8x128xf32>
    %90 = vector.extract_strided_slice %26 {offsets = [24, 0], sizes = [8, 512], strides = [1, 1]} : vector<64x512xf32> to vector<8x512xf32>
    %91 = arith.truncf %89 : vector<8x128xf32> to vector<8x128xbf16>
    %cst_27 = arith.constant dense<0.000000e+00> : vector<8x512xf32>
    %92 = tpu.matmul %91, %27, %cst_27 {dimension_numbers = #tpu.dot_dimension_numbers<[1], [0], [0], [1], [0, 0, 1, 1], [], []>} : vector<8x128xbf16>, vector<128x512xbf16>, vector<8x512xf32> -> vector<8x512xf32>
    %93 = arith.addf %90, %92 : vector<8x512xf32>
    %94 = vector.extract_strided_slice %93 {offsets = [0, 0], sizes = [8, 384], strides = [1, 1]} : vector<8x512xf32> to vector<8x384xf32>
    %95 = arith.negf %94 : vector<8x384xf32>
    %96 = math.exp %95 : vector<8x384xf32>
    %cst_28 = arith.constant 1.000000e+00 : f32
    %97 = vector.broadcast %cst_28 : f32 to vector<8x384xf32>
    %98 = arith.addf %97, %96 : vector<8x384xf32>
    %99 = arith.divf %97, %98 : vector<8x384xf32>
    %100 = vector.extract_strided_slice %93 {offsets = [0, 384], sizes = [8, 128], strides = [1, 1]} : vector<8x512xf32> to vector<8x128xf32>
    %101 = math.tanh %100 : vector<8x128xf32>
    %102 = vector.extract_strided_slice %99 {offsets = [0, 0], sizes = [8, 128], strides = [1, 1]} : vector<8x384xf32> to vector<8x128xf32>
    %103 = vector.extract_strided_slice %99 {offsets = [0, 128], sizes = [8, 128], strides = [1, 1]} : vector<8x384xf32> to vector<8x128xf32>
    %104 = vector.extract_strided_slice %99 {offsets = [0, 256], sizes = [8, 128], strides = [1, 1]} : vector<8x384xf32> to vector<8x128xf32>
    %105 = arith.mulf %103, %87 : vector<8x128xf32>
    %106 = arith.mulf %102, %101 : vector<8x128xf32>
    %107 = arith.addf %105, %106 : vector<8x128xf32>
    %108 = math.tanh %107 : vector<8x128xf32>
    %109 = arith.mulf %104, %108 : vector<8x128xf32>
    %110 = vector.extract_strided_slice %26 {offsets = [32, 0], sizes = [8, 512], strides = [1, 1]} : vector<64x512xf32> to vector<8x512xf32>
    %111 = arith.truncf %109 : vector<8x128xf32> to vector<8x128xbf16>
    %cst_29 = arith.constant dense<0.000000e+00> : vector<8x512xf32>
    %112 = tpu.matmul %111, %27, %cst_29 {dimension_numbers = #tpu.dot_dimension_numbers<[1], [0], [0], [1], [0, 0, 1, 1], [], []>} : vector<8x128xbf16>, vector<128x512xbf16>, vector<8x512xf32> -> vector<8x512xf32>
    %113 = arith.addf %110, %112 : vector<8x512xf32>
    %114 = vector.extract_strided_slice %113 {offsets = [0, 0], sizes = [8, 384], strides = [1, 1]} : vector<8x512xf32> to vector<8x384xf32>
    %115 = arith.negf %114 : vector<8x384xf32>
    %116 = math.exp %115 : vector<8x384xf32>
    %cst_30 = arith.constant 1.000000e+00 : f32
    %117 = vector.broadcast %cst_30 : f32 to vector<8x384xf32>
    %118 = arith.addf %117, %116 : vector<8x384xf32>
    %119 = arith.divf %117, %118 : vector<8x384xf32>
    %120 = vector.extract_strided_slice %113 {offsets = [0, 384], sizes = [8, 128], strides = [1, 1]} : vector<8x512xf32> to vector<8x128xf32>
    %121 = math.tanh %120 : vector<8x128xf32>
    %122 = vector.extract_strided_slice %119 {offsets = [0, 0], sizes = [8, 128], strides = [1, 1]} : vector<8x384xf32> to vector<8x128xf32>
    %123 = vector.extract_strided_slice %119 {offsets = [0, 128], sizes = [8, 128], strides = [1, 1]} : vector<8x384xf32> to vector<8x128xf32>
    %124 = vector.extract_strided_slice %119 {offsets = [0, 256], sizes = [8, 128], strides = [1, 1]} : vector<8x384xf32> to vector<8x128xf32>
    %125 = arith.mulf %123, %107 : vector<8x128xf32>
    %126 = arith.mulf %122, %121 : vector<8x128xf32>
    %127 = arith.addf %125, %126 : vector<8x128xf32>
    %128 = math.tanh %127 : vector<8x128xf32>
    %129 = arith.mulf %124, %128 : vector<8x128xf32>
    %130 = vector.extract_strided_slice %26 {offsets = [40, 0], sizes = [8, 512], strides = [1, 1]} : vector<64x512xf32> to vector<8x512xf32>
    %131 = arith.truncf %129 : vector<8x128xf32> to vector<8x128xbf16>
    %cst_31 = arith.constant dense<0.000000e+00> : vector<8x512xf32>
    %132 = tpu.matmul %131, %27, %cst_31 {dimension_numbers = #tpu.dot_dimension_numbers<[1], [0], [0], [1], [0, 0, 1, 1], [], []>} : vector<8x128xbf16>, vector<128x512xbf16>, vector<8x512xf32> -> vector<8x512xf32>
    %133 = arith.addf %130, %132 : vector<8x512xf32>
    %134 = vector.extract_strided_slice %133 {offsets = [0, 0], sizes = [8, 384], strides = [1, 1]} : vector<8x512xf32> to vector<8x384xf32>
    %135 = arith.negf %134 : vector<8x384xf32>
    %136 = math.exp %135 : vector<8x384xf32>
    %cst_32 = arith.constant 1.000000e+00 : f32
    %137 = vector.broadcast %cst_32 : f32 to vector<8x384xf32>
    %138 = arith.addf %137, %136 : vector<8x384xf32>
    %139 = arith.divf %137, %138 : vector<8x384xf32>
    %140 = vector.extract_strided_slice %133 {offsets = [0, 384], sizes = [8, 128], strides = [1, 1]} : vector<8x512xf32> to vector<8x128xf32>
    %141 = math.tanh %140 : vector<8x128xf32>
    %142 = vector.extract_strided_slice %139 {offsets = [0, 0], sizes = [8, 128], strides = [1, 1]} : vector<8x384xf32> to vector<8x128xf32>
    %143 = vector.extract_strided_slice %139 {offsets = [0, 128], sizes = [8, 128], strides = [1, 1]} : vector<8x384xf32> to vector<8x128xf32>
    %144 = vector.extract_strided_slice %139 {offsets = [0, 256], sizes = [8, 128], strides = [1, 1]} : vector<8x384xf32> to vector<8x128xf32>
    %145 = arith.mulf %143, %127 : vector<8x128xf32>
    %146 = arith.mulf %142, %141 : vector<8x128xf32>
    %147 = arith.addf %145, %146 : vector<8x128xf32>
    %148 = math.tanh %147 : vector<8x128xf32>
    %149 = arith.mulf %144, %148 : vector<8x128xf32>
    %150 = vector.extract_strided_slice %26 {offsets = [48, 0], sizes = [8, 512], strides = [1, 1]} : vector<64x512xf32> to vector<8x512xf32>
    %151 = arith.truncf %149 : vector<8x128xf32> to vector<8x128xbf16>
    %cst_33 = arith.constant dense<0.000000e+00> : vector<8x512xf32>
    %152 = tpu.matmul %151, %27, %cst_33 {dimension_numbers = #tpu.dot_dimension_numbers<[1], [0], [0], [1], [0, 0, 1, 1], [], []>} : vector<8x128xbf16>, vector<128x512xbf16>, vector<8x512xf32> -> vector<8x512xf32>
    %153 = arith.addf %150, %152 : vector<8x512xf32>
    %154 = vector.extract_strided_slice %153 {offsets = [0, 0], sizes = [8, 384], strides = [1, 1]} : vector<8x512xf32> to vector<8x384xf32>
    %155 = arith.negf %154 : vector<8x384xf32>
    %156 = math.exp %155 : vector<8x384xf32>
    %cst_34 = arith.constant 1.000000e+00 : f32
    %157 = vector.broadcast %cst_34 : f32 to vector<8x384xf32>
    %158 = arith.addf %157, %156 : vector<8x384xf32>
    %159 = arith.divf %157, %158 : vector<8x384xf32>
    %160 = vector.extract_strided_slice %153 {offsets = [0, 384], sizes = [8, 128], strides = [1, 1]} : vector<8x512xf32> to vector<8x128xf32>
    %161 = math.tanh %160 : vector<8x128xf32>
    %162 = vector.extract_strided_slice %159 {offsets = [0, 0], sizes = [8, 128], strides = [1, 1]} : vector<8x384xf32> to vector<8x128xf32>
    %163 = vector.extract_strided_slice %159 {offsets = [0, 128], sizes = [8, 128], strides = [1, 1]} : vector<8x384xf32> to vector<8x128xf32>
    %164 = vector.extract_strided_slice %159 {offsets = [0, 256], sizes = [8, 128], strides = [1, 1]} : vector<8x384xf32> to vector<8x128xf32>
    %165 = arith.mulf %163, %147 : vector<8x128xf32>
    %166 = arith.mulf %162, %161 : vector<8x128xf32>
    %167 = arith.addf %165, %166 : vector<8x128xf32>
    %168 = math.tanh %167 : vector<8x128xf32>
    %169 = arith.mulf %164, %168 : vector<8x128xf32>
    %170 = vector.extract_strided_slice %26 {offsets = [56, 0], sizes = [8, 512], strides = [1, 1]} : vector<64x512xf32> to vector<8x512xf32>
    %171 = arith.truncf %169 : vector<8x128xf32> to vector<8x128xbf16>
    %cst_35 = arith.constant dense<0.000000e+00> : vector<8x512xf32>
    %172 = tpu.matmul %171, %27, %cst_35 {dimension_numbers = #tpu.dot_dimension_numbers<[1], [0], [0], [1], [0, 0, 1, 1], [], []>} : vector<8x128xbf16>, vector<128x512xbf16>, vector<8x512xf32> -> vector<8x512xf32>
    %173 = arith.addf %170, %172 : vector<8x512xf32>
    %174 = vector.extract_strided_slice %173 {offsets = [0, 0], sizes = [8, 384], strides = [1, 1]} : vector<8x512xf32> to vector<8x384xf32>
    %175 = arith.negf %174 : vector<8x384xf32>
    %176 = math.exp %175 : vector<8x384xf32>
    %cst_36 = arith.constant 1.000000e+00 : f32
    %177 = vector.broadcast %cst_36 : f32 to vector<8x384xf32>
    %178 = arith.addf %177, %176 : vector<8x384xf32>
    %179 = arith.divf %177, %178 : vector<8x384xf32>
    %180 = vector.extract_strided_slice %173 {offsets = [0, 384], sizes = [8, 128], strides = [1, 1]} : vector<8x512xf32> to vector<8x128xf32>
    %181 = math.tanh %180 : vector<8x128xf32>
    %182 = vector.extract_strided_slice %179 {offsets = [0, 0], sizes = [8, 128], strides = [1, 1]} : vector<8x384xf32> to vector<8x128xf32>
    %183 = vector.extract_strided_slice %179 {offsets = [0, 128], sizes = [8, 128], strides = [1, 1]} : vector<8x384xf32> to vector<8x128xf32>
    %184 = vector.extract_strided_slice %179 {offsets = [0, 256], sizes = [8, 128], strides = [1, 1]} : vector<8x384xf32> to vector<8x128xf32>
    %185 = arith.mulf %183, %167 : vector<8x128xf32>
    %186 = arith.mulf %182, %181 : vector<8x128xf32>
    %187 = arith.addf %185, %186 : vector<8x128xf32>
    %188 = math.tanh %187 : vector<8x128xf32>
    %189 = arith.mulf %184, %188 : vector<8x128xf32>
    %190 = arith.truncf %18 : vector<8x128xf32> to vector<8x128xbf16>
    %191 = arith.truncf %189 : vector<8x128xf32> to vector<8x128xbf16>
    %192 = tpu.concatenate %190, %191 in 1 : vector<8x128xbf16>, vector<8x128xbf16> -> vector<8x256xbf16>
    %c0_37 = arith.constant 0 : index
    %c0_38 = arith.constant 0 : index
    %193 = vector.load %arg8[%c0_37, %c0_38] : memref<256x128xbf16, #tpu.memory_space<vmem>>, vector<256x128xbf16>
    %cst_39 = arith.constant dense<0.000000e+00> : vector<8x128xf32>
    %194 = tpu.matmul %192, %193, %cst_39 {dimension_numbers = #tpu.dot_dimension_numbers<[1], [0], [0], [1], [0, 0, 1, 1], [], []>} : vector<8x256xbf16>, vector<256x128xbf16>, vector<8x128xf32> -> vector<8x128xf32>
    %c0_40 = arith.constant 0 : index
    %c0_41 = arith.constant 0 : index
    %195 = vector.load %arg9[%c0_40, %c0_41] : memref<1x128xf32, #tpu.memory_space<vmem>>, vector<1x128xf32>
    %196 = vector.broadcast %195 : vector<1x128xf32> to vector<8x128xf32>
    %197 = arith.addf %194, %196 : vector<8x128xf32>
    %cst_42 = arith.constant 0.000000e+00 : f32
    %198 = vector.broadcast %cst_42 : f32 to vector<8x128xf32>
    %199 = arith.maximumf %197, %198 : vector<8x128xf32>
    %200 = arith.truncf %199 : vector<8x128xf32> to vector<8x128xbf16>
    %c0_43 = arith.constant 0 : index
    %c0_44 = arith.constant 0 : index
    %201 = vector.load %arg10[%c0_43, %c0_44] : memref<128x256xbf16, #tpu.memory_space<vmem>>, vector<128x256xbf16>
    %cst_45 = arith.constant dense<0.000000e+00> : vector<8x256xf32>
    %202 = tpu.matmul %200, %201, %cst_45 {dimension_numbers = #tpu.dot_dimension_numbers<[1], [0], [0], [1], [0, 0, 1, 1], [], []>} : vector<8x128xbf16>, vector<128x256xbf16>, vector<8x256xf32> -> vector<8x256xf32>
    %c0_46 = arith.constant 0 : index
    %c0_47 = arith.constant 0 : index
    %203 = vector.load %arg11[%c0_46, %c0_47] : memref<1x256xf32, #tpu.memory_space<vmem>>, vector<1x256xf32>
    %204 = vector.broadcast %203 : vector<1x256xf32> to vector<8x256xf32>
    %205 = arith.addf %202, %204 : vector<8x256xf32>
    %206 = tpu.iota {dimensions = array<i32: 0>} : vector<8x256xi32>
    %c2_i32 = arith.constant 2 : i32
    %207 = vector.broadcast %c2_i32 : i32 to vector<8x256xi32>
    %208 = arith.cmpi slt, %206, %207 : vector<8x256xi32>
    %cst_48 = arith.constant -1.000000e+30 : f32
    %209 = vector.broadcast %cst_48 : f32 to vector<8x256xf32>
    %210 = arith.select %208, %205, %209 : vector<8x256xi1>, vector<8x256xf32>
    %cst_49 = arith.constant dense<0xFF800000> : vector<256xf32>
    %211 = vector.multi_reduction <maximumf>, %210, %cst_49 [0] : vector<8x256xf32> to vector<256xf32>
    %212 = vector.shape_cast %211 : vector<256xf32> to vector<1x256xf32>
    %213 = vector.broadcast %212 : vector<1x256xf32> to vector<8x256xf32>
    %214 = arith.subf %210, %213 : vector<8x256xf32>
    %215 = math.exp %214 : vector<8x256xf32>
    %cst_50 = arith.constant dense<0.000000e+00> : vector<256xf32>
    %216 = vector.multi_reduction <add>, %215, %cst_50 [0] : vector<8x256xf32> to vector<256xf32>
    %217 = vector.shape_cast %216 : vector<256xf32> to vector<1x256xf32>
    %218 = tpu.reciprocal %217 {approx = true} : vector<1x256xf32> -> vector<1x256xf32>
    %219 = vector.broadcast %218 : vector<1x256xf32> to vector<8x256xf32>
    %220 = arith.mulf %215, %219 : vector<8x256xf32>
    %c0_51 = arith.constant 0 : index
    %c0_52 = arith.constant 0 : index
    %221 = vector.load %arg12[%c0_51, %c0_52] : memref<8x256xf32, #tpu.memory_space<vmem>>, vector<8x256xf32>
    tpu.vector_store %arg12[%c0_51, %c0_52], %220 {strides = array<i32>} : memref<8x256xf32, #tpu.memory_space<vmem>>, vector<8x256xf32>,
    return
  }
  func.func @transform_0(%arg0: i32) -> (i32, i32, i32) {
    %c0_i32 = arith.constant 0 : i32
    %c0_i32_0 = arith.constant 0 : i32
    %c0_i32_1 = arith.constant 0 : i32
    %c0_i32_2 = arith.constant 0 : i32
    return %c0_i32, %c0_i32_0, %c0_i32_1 : i32, i32, i32
  }
  func.func @transform_1(%arg0: i32) -> (i32, i32) {
    %c0_i32 = arith.constant 0 : i32
    %c0_i32_0 = arith.constant 0 : i32
    %c0_i32_1 = arith.constant 0 : i32
    return %c0_i32, %c0_i32_0 : i32, i32
  }
  func.func @transform_2(%arg0: i32) -> (i32, i32) {
    %c0_i32 = arith.constant 0 : i32
    %c0_i32_0 = arith.constant 0 : i32
    %c0_i32_1 = arith.constant 0 : i32
    return %c0_i32, %c0_i32_0 : i32, i32
  }
  func.func @transform_3(%arg0: i32) -> (i32, i32) {
    %c0_i32 = arith.constant 0 : i32
    %c0_i32_0 = arith.constant 0 : i32
    %c0_i32_1 = arith.constant 0 : i32
    return %c0_i32, %c0_i32_0 : i32, i32
  }
  func.func @transform_4(%arg0: i32) -> (i32, i32) {
    %c0_i32 = arith.constant 0 : i32
    %c0_i32_0 = arith.constant 0 : i32
    %c0_i32_1 = arith.constant 0 : i32
    return %c0_i32, %c0_i32_0 : i32, i32
  }
  func.func @transform_5(%arg0: i32) -> (i32, i32) {
    %c0_i32 = arith.constant 0 : i32
    %c0_i32_0 = arith.constant 0 : i32
    %c0_i32_1 = arith.constant 0 : i32
    return %c0_i32, %c0_i32_0 : i32, i32
  }
  func.func @transform_6(%arg0: i32) -> (i32, i32) {
    %c0_i32 = arith.constant 0 : i32
    %c0_i32_0 = arith.constant 0 : i32
    %c0_i32_1 = arith.constant 0 : i32
    return %c0_i32, %c0_i32_0 : i32, i32
  }
  func.func @transform_7(%arg0: i32) -> (i32, i32) {
    %c0_i32 = arith.constant 0 : i32
    %c0_i32_0 = arith.constant 0 : i32
    %c0_i32_1 = arith.constant 0 : i32
    return %c0_i32, %c0_i32_0 : i32, i32
  }
  func.func @transform_8(%arg0: i32) -> (i32, i32) {
    %c0_i32 = arith.constant 0 : i32
    %c0_i32_0 = arith.constant 0 : i32
    %c0_i32_1 = arith.constant 0 : i32
    return %c0_i32, %c0_i32_0 : i32, i32
  }
  func.func @transform_9(%arg0: i32) -> (i32, i32) {
    %c0_i32 = arith.constant 0 : i32
    %c0_i32_0 = arith.constant 0 : i32
    %c0_i32_1 = arith.constant 0 : i32
    return %c0_i32, %c0_i32_0 : i32, i32
  }
  func.func @transform_10(%arg0: i32) -> (i32, i32) {
    %c0_i32 = arith.constant 0 : i32
    %c0_i32_0 = arith.constant 0 : i32
    %c0_i32_1 = arith.constant 0 : i32
    return %c0_i32, %c0_i32_0 : i32, i32
  }
  func.func @transform_11(%arg0: i32) -> (i32, i32) {
    %c0_i32 = arith.constant 0 : i32
    %c0_i32_0 = arith.constant 0 : i32
    %c0_i32_1 = arith.constant 0 : i32
    return %c0_i32, %c0_i32_0 : i32, i32
  }
}

</mosaic_0001>

<llo_original>
// kernel: concat_net_forward.1
$region0: #{concat_net_forward.1}
  #allocation0 [shape = 'u32[]', space=smem, size = 0x4, offset = 0x4, fixed_abs, tag = 'smem constant byte address 0x4 - core index']
  #allocation1 [shape = 'u32[72,128]{1,0:T(1,128)}', space=vmem, size = 0x9000, scoped, tag = 'internal scratch']
  %s0 = inlined_call_operand.vmem [shape: bf16[8,16,128], index: 0, kind: input, shape index: {}]
  %s1 = inlined_call_operand.vmem [shape: bf16[128,128], index: 1, kind: input, shape index: {}]
  %s2 = inlined_call_operand.vmem [shape: f32[1,128], index: 2, kind: input, shape index: {}]
  %s3 = inlined_call_operand.vmem [shape: f32[64,32], index: 3, kind: input, shape index: {}]
  %s4 = inlined_call_operand.vmem [shape: bf16[32,512], index: 4, kind: input, shape index: {}]
  %s5 = inlined_call_operand.vmem [shape: bf16[128,512], index: 5, kind: input, shape index: {}]
  %s6 = inlined_call_operand.vmem [shape: f32[1,512], index: 6, kind: input, shape index: {}]
  %s7 = inlined_call_operand.vmem [shape: bf16[256,128], index: 7, kind: input, shape index: {}]
  %s8 = inlined_call_operand.vmem [shape: f32[1,128], index: 8, kind: input, shape index: {}]
  %s9 = inlined_call_operand.vmem [shape: bf16[128,256], index: 9, kind: input, shape index: {}]
  %s10 = inlined_call_operand.vmem [shape: f32[1,256], index: 10, kind: input, shape index: {}]
  %s11 = inlined_call_operand.vmem [shape: f32[8,256], index: 11, kind: output, shape index: {}]
  %s12 = sld [smem:[#allocation0]]
  $region54: #{concat_net_forward.1} parent=0
    _
  %s14 = ssub.s32 1, %s12
  %s15 = scalar_select 0, %s14, %s12
  // Predicated region
  $region2: #{concat_net_forward.1} parent=0 // pred_check
    _
  $region3: #{concat_net_forward.1} parent=0 // pred_check_branch
    %17 = sbr.rel (0) target = $region5
  $region4: #{concat_net_forward.1} parent=0 // pred_region
    _
  $region5: #{concat_net_forward.1} parent=0 // pred_fallthru
    _
  // Predicated region
  $region6: #{concat_net_forward.1} parent=0 // pred_check
    _
  $region7: #{concat_net_forward.1} parent=0 // pred_check_branch
    %19 = sbr.rel (0) target = $region9
  $region8: #{concat_net_forward.1} parent=0 // pred_region
    _
  $region9: #{concat_net_forward.1} parent=0 // pred_fallthru
    _
  // Predicated region
  $region10: #{concat_net_forward.1} parent=0 // pred_check
    _
  $region11: #{concat_net_forward.1} parent=0 // pred_check_branch
    %21 = sbr.rel (0) target = $region13
  $region12: #{concat_net_forward.1} parent=0 // pred_region
    _
  $region13: #{concat_net_forward.1} parent=0 // pred_fallthru
    _
  // Predicated region
  $region14: #{concat_net_forward.1} parent=0 // pred_check
    _
  $region15: #{concat_net_forward.1} parent=0 // pred_check_branch
    %23 = sbr.rel (0) target = $region17
  $region16: #{concat_net_forward.1} parent=0 // pred_region
    _
  $region17: #{concat_net_forward.1} parent=0 // pred_fallthru
    _
  // Predicated region
  $region18: #{concat_net_forward.1} parent=0 // pred_check
    _
  $region19: #{concat_net_forward.1} parent=0 // pred_check_branch
    %25 = sbr.rel (0) target = $region21
  $region20: #{concat_net_forward.1} parent=0 // pred_region
    _
  $region21: #{concat_net_forward.1} parent=0 // pred_fallthru
    _
  // Predicated region
  $region22: #{concat_net_forward.1} parent=0 // pred_check
    _
  $region23: #{concat_net_forward.1} parent=0 // pred_check_branch
    %27 = sbr.rel (0) target = $region25
  $region24: #{concat_net_forward.1} parent=0 // pred_region
    _
  $region25: #{concat_net_forward.1} parent=0 // pred_fallthru
    _
  // Predicated region
  $region26: #{concat_net_forward.1} parent=0 // pred_check
    _
  $region27: #{concat_net_forward.1} parent=0 // pred_check_branch
    %29 = sbr.rel (0) target = $region29
  $region28: #{concat_net_forward.1} parent=0 // pred_region
    _
  $region29: #{concat_net_forward.1} parent=0 // pred_fallthru
    _
  // Predicated region
  $region30: #{concat_net_forward.1} parent=0 // pred_check
    _
  $region31: #{concat_net_forward.1} parent=0 // pred_check_branch
    %31 = sbr.rel (0) target = $region33
  $region32: #{concat_net_forward.1} parent=0 // pred_region
    _
  $region33: #{concat_net_forward.1} parent=0 // pred_fallthru
    _
  // Predicated region
  $region34: #{concat_net_forward.1} parent=0 // pred_check
    _
  $region35: #{concat_net_forward.1} parent=0 // pred_check_branch
    %33 = sbr.rel (0) target = $region37
  $region36: #{concat_net_forward.1} parent=0 // pred_region
    _
  $region37: #{concat_net_forward.1} parent=0 // pred_fallthru
    _
  // Predicated region
  $region38: #{concat_net_forward.1} parent=0 // pred_check
    _
  $region39: #{concat_net_forward.1} parent=0 // pred_check_branch
    %35 = sbr.rel (0) target = $region41
  $region40: #{concat_net_forward.1} parent=0 // pred_region
    _
  $region41: #{concat_net_forward.1} parent=0 // pred_fallthru
    _
  // Predicated region
  $region42: #{concat_net_forward.1} parent=0 // pred_check
    _
  $region43: #{concat_net_forward.1} parent=0 // pred_check_branch
    %37 = sbr.rel (0) target = $region45
  $region44: #{concat_net_forward.1} parent=0 // pred_region
    _
  $region45: #{concat_net_forward.1} parent=0 // pred_fallthru
    _
  %v39 = vld [vmem:[%s0] sm:$0xf]
  %v40 = vld [vmem:[%s0 + $0x4] sm:$0xf]
  %v41 = vld [vmem:[%s0 + $0x8] sm:$0xf]
  %v42 = vld [vmem:[%s0 + $0xc] sm:$0xf]
  %v43 = vld [vmem:[%s0 + $0x10] sm:$0xf]
  %v44 = vld [vmem:[%s0 + $0x14] sm:$0xf]
  %v45 = vld [vmem:[%s0 + $0x18] sm:$0xf]
  %v46 = vld [vmem:[%s0 + $0x1c] sm:$0xf]
  %v47 = vld [vmem:[%s0 + $0x20] sm:$0xf]
  %v48 = vld [vmem:[%s0 + $0x24] sm:$0xf]
  %v49 = vld [vmem:[%s0 + $0x28] sm:$0xf]
  %v50 = vld [vmem:[%s0 + $0x2c] sm:$0xf]
  %v51 = vld [vmem:[%s0 + $0x30] sm:$0xf]
  %v52 = vld [vmem:[%s0 + $0x34] sm:$0xf]
  %v53 = vld [vmem:[%s0 + $0x38] sm:$0xf]
  %v54 = vld [vmem:[%s0 + $0x3c] sm:$0xf]
  %v55 = vunpack.c.l.bf16 %v39
  %v56 = vunpack.c.l.bf16 %v40
  %v57 = vunpack.c.l.bf16 %v41
  %v58 = vunpack.c.l.bf16 %v42
  %v59 = vunpack.c.l.bf16 %v43
  %v60 = vunpack.c.l.bf16 %v44
  %v61 = vunpack.c.l.bf16 %v45
  %v62 = vunpack.c.l.bf16 %v46
  %v63 = vunpack.c.l.bf16 %v47
  %v64 = vunpack.c.l.bf16 %v48
  %v65 = vunpack.c.l.bf16 %v49
  %v66 = vunpack.c.l.bf16 %v50
  %v67 = vunpack.c.l.bf16 %v51
  %v68 = vunpack.c.l.bf16 %v52
  %v69 = vunpack.c.l.bf16 %v53
  %v70 = vunpack.c.l.bf16 %v54
  %v71 = vmul.f32 %v55, %v55
  %v72 = vmul.f32 %v56, %v56
  %v73 = vmul.f32 %v57, %v57
  %v74 = vmul.f32 %v58, %v58
  %v75 = vmul.f32 %v59, %v59
  %v76 = vmul.f32 %v60, %v60
  %v77 = vmul.f32 %v61, %v61
  %v78 = vmul.f32 %v62, %v62
  %v79 = vmul.f32 %v63, %v63
  %v80 = vmul.f32 %v64, %v64
  %v81 = vmul.f32 %v65, %v65
  %v82 = vmul.f32 %v66, %v66
  %v83 = vmul.f32 %v67, %v67
  %v84 = vmul.f32 %v68, %v68
  %v85 = vmul.f32 %v69, %v69
  %v86 = vmul.f32 %v70, %v70
  %87 = vadd.xlane.f32.xlu0 %v71
  %v88 = vpop.xlane.xlu0 %87
  %89 = vadd.xlane.f32.xlu0 %v72
  %v90 = vpop.xlane.xlu0 %89
  %91 = vadd.xlane.f32.xlu0 %v73
  %v92 = vpop.xlane.xlu0 %91
  %93 = vadd.xlane.f32.xlu0 %v74
  %v94 = vpop.xlane.xlu0 %93
  %95 = vadd.xlane.f32.xlu0 %v75
  %v96 = vpop.xlane.xlu0 %95
  %97 = vadd.xlane.f32.xlu0 %v76
  %v98 = vpop.xlane.xlu0 %97
  %99 = vadd.xlane.f32.xlu0 %v77
  %v100 = vpop.xlane.xlu0 %99
  %101 = vadd.xlane.f32.xlu0 %v78
  %v102 = vpop.xlane.xlu0 %101
  %103 = vadd.xlane.f32.xlu0 %v79
  %v104 = vpop.xlane.xlu0 %103
  %105 = vadd.xlane.f32.xlu0 %v80
  %v106 = vpop.xlane.xlu0 %105
  %107 = vadd.xlane.f32.xlu0 %v81
  %v108 = vpop.xlane.xlu0 %107
  %109 = vadd.xlane.f32.xlu0 %v82
  %v110 = vpop.xlane.xlu0 %109
  %111 = vadd.xlane.f32.xlu0 %v83
  %v112 = vpop.xlane.xlu0 %111
  %113 = vadd.xlane.f32.xlu0 %v84
  %v114 = vpop.xlane.xlu0 %113
  %115 = vadd.xlane.f32.xlu0 %v85
  %v116 = vpop.xlane.xlu0 %115
  %117 = vadd.xlane.f32.xlu0 %v86
  %v118 = vpop.xlane.xlu0 %117
  %v119 = vmax.f32 %v88, 1e-24
  %v120 = vmax.f32 %v90, 1e-24
  %v121 = vmax.f32 %v92, 1e-24
  %v122 = vmax.f32 %v94, 1e-24
  %v123 = vmax.f32 %v96, 1e-24
  %v124 = vmax.f32 %v98, 1e-24
  %v125 = vmax.f32 %v100, 1e-24
  %v126 = vmax.f32 %v102, 1e-24
  %v127 = vmax.f32 %v104, 1e-24
  %v128 = vmax.f32 %v106, 1e-24
  %v129 = vmax.f32 %v108, 1e-24
  %v130 = vmax.f32 %v110, 1e-24
  %v131 = vmax.f32 %v112, 1e-24
  %v132 = vmax.f32 %v114, 1e-24
  %v133 = vmax.f32 %v116, 1e-24
  %v134 = vmax.f32 %v118, 1e-24
  %v135 = vrsqrt.pop %v119
  %v136 = vmul.f32 %v135, %v119
  %v137 = vmul.f32 %v136, %v135
  %v138 = vmul.f32 0.5, %v137
  %v139 = vsub.f32 1.5, %v138
  %v140 = vmul.f32 %v135, %v139
  %vm141 = vweird.f32 %v119
  %vm142 = vweird.f32 %v135
  %vm143 = vmor %vm141, %vm142
  %v144 = vsel %vm143, %v135, %v140
  %v145 = vrsqrt.pop %v120
  %v146 = vmul.f32 %v145, %v120
  %v147 = vmul.f32 %v146, %v145
  %v148 = vmul.f32 0.5, %v147
  %v149 = vsub.f32 1.5, %v148
  %v150 = vmul.f32 %v145, %v149
  %vm151 = vweird.f32 %v120
  %vm152 = vweird.f32 %v145
  %vm153 = vmor %vm151, %vm152
  %v154 = vsel %vm153, %v145, %v150
  %v155 = vrsqrt.pop %v121
  %v156 = vmul.f32 %v155, %v121
  %v157 = vmul.f32 %v156, %v155
  %v158 = vmul.f32 0.5, %v157
  %v159 = vsub.f32 1.5, %v158
  %v160 = vmul.f32 %v155, %v159
  %vm161 = vweird.f32 %v121
  %vm162 = vweird.f32 %v155
  %vm163 = vmor %vm161, %vm162
  %v164 = vsel %vm163, %v155, %v160
  %v165 = vrsqrt.pop %v122
  %v166 = vmul.f32 %v165, %v122
  %v167 = vmul.f32 %v166, %v165
  %v168 = vmul.f32 0.5, %v167
  %v169 = vsub.f32 1.5, %v168
  %v170 = vmul.f32 %v165, %v169
  %vm171 = vweird.f32 %v122
  %vm172 = vweird.f32 %v165
  %vm173 = vmor %vm171, %vm172
  %v174 = vsel %vm173, %v165, %v170
  %v175 = vrsqrt.pop %v123
  %v176 = vmul.f32 %v175, %v123
  %v177 = vmul.f32 %v176, %v175
  %v178 = vmul.f32 0.5, %v177
  %v179 = vsub.f32 1.5, %v178
  %v180 = vmul.f32 %v175, %v179
  %vm181 = vweird.f32 %v123
  %vm182 = vweird.f32 %v175
  %vm183 = vmor %vm181, %vm182
  %v184 = vsel %vm183, %v175, %v180
  %v185 = vrsqrt.pop %v124
  %v186 = vmul.f32 %v185, %v124
  %v187 = vmul.f32 %v186, %v185
  %v188 = vmul.f32 0.5, %v187
  %v189 = vsub.f32 1.5, %v188
  %v190 = vmul.f32 %v185, %v189
  %vm191 = vweird.f32 %v124
  %vm192 = vweird.f32 %v185
  %vm193 = vmor %vm191, %vm192
  %v194 = vsel %vm193, %v185, %v190
  %v195 = vrsqrt.pop %v125
  %v196 = vmul.f32 %v195, %v125
  %v197 = vmul.f32 %v196, %v195
  %v198 = vmul.f32 0.5, %v197
  %v199 = vsub.f32 1.5, %v198
  %v200 = vmul.f32 %v195, %v199
  %vm201 = vweird.f32 %v125
  %vm202 = vweird.f32 %v195
  %vm203 = vmor %vm201, %vm202
  %v204 = vsel %vm203, %v195, %v200
  %v205 = vrsqrt.pop %v126
  %v206 = vmul.f32 %v205, %v126
  %v207 = vmul.f32 %v206, %v205
  %v208 = vmul.f32 0.5, %v207
  %v209 = vsub.f32 1.5, %v208
  %v210 = vmul.f32 %v205, %v209
  %vm211 = vweird.f32 %v126
  %vm212 = vweird.f32 %v205
  %vm213 = vmor %vm211, %vm212
  %v214 = vsel %vm213, %v205, %v210
  %v215 = vrsqrt.pop %v127
  %v216 = vmul.f32 %v215, %v127
  %v217 = vmul.f32 %v216, %v215
  %v218 = vmul.f32 0.5, %v217
  %v219 = vsub.f32 1.5, %v218
  %v220 = vmul.f32 %v215, %v219
  %vm221 = vweird.f32 %v127
  %vm222 = vweird.f32 %v215
  %vm223 = vmor %vm221, %vm222
  %v224 = vsel %vm223, %v215, %v220
  %v225 = vrsqrt.pop %v128
  %v226 = vmul.f32 %v225, %v128
  %v227 = vmul.f32 %v226, %v225
  %v228 = vmul.f32 0.5, %v227
  %v229 = vsub.f32 1.5, %v228
  %v230 = vmul.f32 %v225, %v229
  %vm231 = vweird.f32 %v128
  %vm232 = vweird.f32 %v225
  %vm233 = vmor %vm231, %vm232
  %v234 = vsel %vm233, %v225, %v230
  %v235 = vrsqrt.pop %v129
  %v236 = vmul.f32 %v235, %v129
  %v237 = vmul.f32 %v236, %v235
  %v238 = vmul.f32 0.5, %v237
  %v239 = vsub.f32 1.5, %v238
  %v240 = vmul.f32 %v235, %v239
  %vm241 = vweird.f32 %v129
  %vm242 = vweird.f32 %v235
  %vm243 = vmor %vm241, %vm242
  %v244 = vsel %vm243, %v235, %v240
  %v245 = vrsqrt.pop %v130
  %v246 = vmul.f32 %v245, %v130
  %v247 = vmul.f32 %v246, %v245
  %v248 = vmul.f32 0.5, %v247
  %v249 = vsub.f32 1.5, %v248
  %v250 = vmul.f32 %v245, %v249
  %vm251 = vweird.f32 %v130
  %vm252 = vweird.f32 %v245
  %vm253 = vmor %vm251, %vm252
  %v254 = vsel %vm253, %v245, %v250
  %v255 = vrsqrt.pop %v131
  %v256 = vmul.f32 %v255, %v131
  %v257 = vmul.f32 %v256, %v255
  %v258 = vmul.f32 0.5, %v257
  %v259 = vsub.f32 1.5, %v258
  %v260 = vmul.f32 %v255, %v259
  %vm261 = vweird.f32 %v131
  %vm262 = vweird.f32 %v255
  %vm263 = vmor %vm261, %vm262
  %v264 = vsel %vm263, %v255, %v260
  %v265 = vrsqrt.pop %v132
  %v266 = vmul.f32 %v265, %v132
  %v267 = vmul.f32 %v266, %v265
  %v268 = vmul.f32 0.5, %v267
  %v269 = vsub.f32 1.5, %v268
  %v270 = vmul.f32 %v265, %v269
  %vm271 = vweird.f32 %v132
  %vm272 = vweird.f32 %v265
  %vm273 = vmor %vm271, %vm272
  %v274 = vsel %vm273, %v265, %v270
  %v275 = vrsqrt.pop %v133
  %v276 = vmul.f32 %v275, %v133
  %v277 = vmul.f32 %v276, %v275
  %v278 = vmul.f32 0.5, %v277
  %v279 = vsub.f32 1.5, %v278
  %v280 = vmul.f32 %v275, %v279
  %vm281 = vweird.f32 %v133
  %vm282 = vweird.f32 %v275
  %vm283 = vmor %vm281, %vm282
  %v284 = vsel %vm283, %v275, %v280
  %v285 = vrsqrt.pop %v134
  %v286 = vmul.f32 %v285, %v134
  %v287 = vmul.f32 %v286, %v285
  %v288 = vmul.f32 0.5, %v287
  %v289 = vsub.f32 1.5, %v288
  %v290 = vmul.f32 %v285, %v289
  %vm291 = vweird.f32 %v134
  %vm292 = vweird.f32 %v285
  %vm293 = vmor %vm291, %vm292
  %v294 = vsel %vm293, %v285, %v290
  %v295 = vmul.f32 %v55, %v144
  %v296 = vmul.f32 %v56, %v154
  %v297 = vmul.f32 %v57, %v164
  %v298 = vmul.f32 %v58, %v174
  %v299 = vmul.f32 %v59, %v184
  %v300 = vmul.f32 %v60, %v194
  %v301 = vmul.f32 %v61, %v204
  %v302 = vmul.f32 %v62, %v214
  %v303 = vmul.f32 %v63, %v224
  %v304 = vmul.f32 %v64, %v234
  %v305 = vmul.f32 %v65, %v244
  %v306 = vmul.f32 %v66, %v254
  %v307 = vmul.f32 %v67, %v264
  %v308 = vmul.f32 %v68, %v274
  %v309 = vmul.f32 %v69, %v284
  %v310 = vmul.f32 %v70, %v294
  %v311 = vadd.f32 %v295, %v296
  %v312 = vrot.slane %v311, 4
  %v313 = vadd.f32 %v311, %v312
  %v314 = vrot.slane %v313, 2
  %v315 = vadd.f32 %v313, %v314
  %v316 = vrot.slane %v315, 1
  %v317 = vadd.f32 %v315, %v316
  %v318 = vadd.f32 %v297, %v298
  %v319 = vrot.slane %v318, 4
  %v320 = vadd.f32 %v318, %v319
  %v321 = vrot.slane %v320, 2
  %v322 = vadd.f32 %v320, %v321
  %v323 = vrot.slane %v322, 1
  %v324 = vadd.f32 %v322, %v323
  %v325 = vadd.f32 %v299, %v300
  %v326 = vrot.slane %v325, 4
  %v327 = vadd.f32 %v325, %v326
  %v328 = vrot.slane %v327, 2
  %v329 = vadd.f32 %v327, %v328
  %v330 = vrot.slane %v329, 1
  %v331 = vadd.f32 %v329, %v330
  %v332 = vadd.f32 %v301, %v302
  %v333 = vrot.slane %v332, 4
  %v334 = vadd.f32 %v332, %v333
  %v335 = vrot.slane %v334, 2
  %v336 = vadd.f32 %v334, %v335
  %v337 = vrot.slane %v336, 1
  %v338 = vadd.f32 %v336, %v337
  %v339 = vadd.f32 %v303, %v304
  %v340 = vrot.slane %v339, 4
  %v341 = vadd.f32 %v339, %v340
  %v342 = vrot.slane %v341, 2
  %v343 = vadd.f32 %v341, %v342
  %v344 = vrot.slane %v343, 1
  %v345 = vadd.f32 %v343, %v344
  %v346 = vadd.f32 %v305, %v306
  %v347 = vrot.slane %v346, 4
  %v348 = vadd.f32 %v346, %v347
  %v349 = vrot.slane %v348, 2
  %v350 = vadd.f32 %v348, %v349
  %v351 = vrot.slane %v350, 1
  %v352 = vadd.f32 %v350, %v351
  %v353 = vadd.f32 %v307, %v308
  %v354 = vrot.slane %v353, 4
  %v355 = vadd.f32 %v353, %v354
  %v356 = vrot.slane %v355, 2
  %v357 = vadd.f32 %v355, %v356
  %v358 = vrot.slane %v357, 1
  %v359 = vadd.f32 %v357, %v358
  %v360 = vadd.f32 %v309, %v310
  %v361 = vrot.slane %v360, 4
  %v362 = vadd.f32 %v360, %v361
  %v363 = vrot.slane %v362, 2
  %v364 = vadd.f32 %v362, %v363
  %v365 = vrot.slane %v364, 1
  %v366 = vadd.f32 %v364, %v365
  %v367 = vrcp.pop 16.0
  %v368 = vmul.f32 16.0, %v367
  %v369 = vsub.f32 1.0, %v368
  %v370 = vmul.f32 %v367, %v369
  %v371 = vadd.f32 %v367, %v370
  %vm372 = vweird.f32 %v367
  %v373 = vsel %vm372, %v367, %v371
  %v374 = vmul.f32 %v317, %v373
  %v375 = vmul.f32 %v324, %v373
  %v376 = vmul.f32 %v331, %v373
  %v377 = vmul.f32 %v338, %v373
  %v378 = vmul.f32 %v345, %v373
  %v379 = vmul.f32 %v352, %v373
  %v380 = vmul.f32 %v359, %v373
  %v381 = vmul.f32 %v366, %v373
  %v382 = vpack.c.bf16 %v374, %v374
  %v383 = vpack.c.bf16 %v375, %v375
  %v384 = vpack.c.bf16 %v376, %v376
  %v385 = vpack.c.bf16 %v377, %v377
  %v386 = vpack.c.bf16 %v378, %v378
  %v387 = vpack.c.bf16 %v379, %v379
  %v388 = vpack.c.bf16 %v380, %v380
  %v389 = vpack.c.bf16 %v381, %v381
  %v390 = vld [vmem:[%s1] sm:$0xf]
  %v391 = vld [vmem:[%s1 + $0x4] sm:$0xf]
  %v392 = vld [vmem:[%s1 + $0x8] sm:$0xf]
  %v393 = vld [vmem:[%s1 + $0xc] sm:$0xf]
  %v394 = vld [vmem:[%s1 + $0x10] sm:$0xf]
  %v395 = vld [vmem:[%s1 + $0x14] sm:$0xf]
  %v396 = vld [vmem:[%s1 + $0x18] sm:$0xf]
  %v397 = vld [vmem:[%s1 + $0x1c] sm:$0xf]
  %v398 = vld [vmem:[%s1 + $0x20] sm:$0xf]
  %v399 = vld [vmem:[%s1 + $0x24] sm:$0xf]
  %v400 = vld [vmem:[%s1 + $0x28] sm:$0xf]
  %v401 = vld [vmem:[%s1 + $0x2c] sm:$0xf]
  %v402 = vld [vmem:[%s1 + $0x30] sm:$0xf]
  %v403 = vld [vmem:[%s1 + $0x34] sm:$0xf]
  %v404 = vld [vmem:[%s1 + $0x38] sm:$0xf]
  %v405 = vld [vmem:[%s1 + $0x3c] sm:$0xf]
  %v406 = vld [vmem:[%s2] sm:$0x1]
  %v408 = vperm.slane %v406, 0
  %v418 = vunpack.c.l.b16 %v382
  %v419 = vunpack.c.l.b16 %v383
  %v420 = vunpack.c.l.b16 %v384
  %v421 = vunpack.c.l.b16 %v385
  %v422 = vunpack.c.l.b16 %v386
  %v423 = vunpack.c.l.b16 %v387
  %v424 = vunpack.c.l.b16 %v388
  %v425 = vunpack.c.l.b16 %v389
  %vm426 = vcmask 1041409
  %v427 = vsel %vm426, %v419, %v418
  %vm428 = vcmask 1042434
  %v429 = vsel %vm428, %v420, %v427
  %vm430 = vcmask 1043459
  %v431 = vsel %vm430, %v421, %v429
  %vm432 = vcmask 1044484
  %v433 = vsel %vm432, %v422, %v431
  %vm434 = vcmask 1045509
  %v435 = vsel %vm434, %v423, %v433
  %vm436 = vcmask 1046534
  %v437 = vsel %vm436, %v424, %v435
  %vm438 = vcmask 1047559
  %v439 = vsel %vm438, %v425, %v437
  %v440 = vpack.c.b16 %v439, %v439
  %v458 = vunpack.c.l.b16 %v390
  %v459 = vunpack.c.l.b16 %v391
  %v460 = vunpack.c.l.b16 %v392
  %v461 = vunpack.c.l.b16 %v393
  %v462 = vunpack.c.l.b16 %v394
  %v463 = vunpack.c.l.b16 %v395
  %v464 = vunpack.c.l.b16 %v396
  %v465 = vunpack.c.l.b16 %v397
  %v466 = vunpack.c.l.b16 %v398
  %v467 = vunpack.c.l.b16 %v399
  %v468 = vunpack.c.l.b16 %v400
  %v469 = vunpack.c.l.b16 %v401
  %v470 = vunpack.c.l.b16 %v402
  %v471 = vunpack.c.l.b16 %v403
  %v472 = vunpack.c.l.b16 %v404
  %v473 = vunpack.c.l.b16 %v405
  %v474 = vpack.c.b16 %v459, %v458
  %v475 = vpack.c.b16 %v461, %v460
  %v476 = vpack.c.b16 %v463, %v462
  %v477 = vpack.c.b16 %v465, %v464
  %v478 = vpack.c.b16 %v467, %v466
  %v479 = vpack.c.b16 %v469, %v468
  %v480 = vpack.c.b16 %v471, %v470
  %v481 = vpack.c.b16 %v473, %v472
  %490 = vmatpush.bf16.msra.mxu0 %v481
  %491 = vmatpush.bf16.msra.mxu0 %v480
  %492 = vmatpush.bf16.msra.mxu0 %v479
  %493 = vmatpush.bf16.msra.mxu0 %v478
  %494 = vmatpush.bf16.msra.mxu0 %v477
  %495 = vmatpush.bf16.msra.mxu0 %v476
  %496 = vmatpush.bf16.msra.mxu0 %v475
  %497 = vmatpush.bf16.msra.mxu0 %v474
  %498 = vmatmul.bf16.gmra.mxu0 %v440
  %v499 = vpop.f32.mrf.mxu0
  %v500 = vadd.f32 %v408, %v499
  %v501 = vpop.f32.mrf.mxu0
  %502 = vdwg.mxu0
  %v503 = vld [vmem:[%s3] sm:$0xff]
  %v504 = vld [vmem:[%s3 + $0x8] sm:$0xff]
  %v505 = vld [vmem:[%s3 + $0x10] sm:$0xff]
  %v506 = vld [vmem:[%s3 + $0x18] sm:$0xff]
  %v507 = vld [vmem:[%s3 + $0x20] sm:$0xff]
  %v508 = vld [vmem:[%s3 + $0x28] sm:$0xff]
  %v509 = vld [vmem:[%s3 + $0x30] sm:$0xff]
  %v510 = vld [vmem:[%s3 + $0x38] sm:$0xff]
  %v511 = vtanh.pop %v503
  %v512 = vtanh.pop %v504
  %v513 = vtanh.pop %v505
  %v514 = vtanh.pop %v506
  %v515 = vtanh.pop %v507
  %v516 = vtanh.pop %v508
  %v517 = vtanh.pop %v509
  %v518 = vtanh.pop %v510
  %v519 = vpack.c.bf16 %v512, %v511
  %v520 = vpack.c.bf16 %v514, %v513
  %v521 = vpack.c.bf16 %v516, %v515
  %v522 = vpack.c.bf16 %v518, %v517
  %v523 = vld [vmem:[%s4] sm:$0xff]
  %v524 = vld [vmem:[%s4 + $0x8] sm:$0xff]
  %v525 = vld [vmem:[%s4 + $0x10] sm:$0xff]
  %v526 = vld [vmem:[%s4 + $0x18] sm:$0xff]
  %v527 = vld [vmem:[%s4 + $0x20] sm:$0xff]
  %v528 = vld [vmem:[%s4 + $0x28] sm:$0xff]
  %v529 = vld [vmem:[%s4 + $0x30] sm:$0xff]
  %v530 = vld [vmem:[%s4 + $0x38] sm:$0xff]
  %v531 = vld [vmem:[%s6] sm:$0xf]
  %v533 = vperm.slane %v531, 0
  %v534 = vperm.slane %v531, 1
  %v535 = vperm.slane %v531, 2
  %v536 = vperm.slane %v531, 3
  %v549 = vunpack.c.l.b16 %v523
  %v550 = vunpack.c.h.b16 %v523
  %v551 = vunpack.c.l.b16 %v524
  %v552 = vunpack.c.h.b16 %v524
  %v553 = vunpack.c.l.b16 %v525
  %v554 = vunpack.c.h.b16 %v525
  %v555 = vunpack.c.l.b16 %v526
  %v556 = vunpack.c.h.b16 %v526
  %v557 = vunpack.c.l.b16 %v527
  %v558 = vunpack.c.h.b16 %v527
  %v559 = vunpack.c.l.b16 %v528
  %v560 = vunpack.c.h.b16 %v528
  %v561 = vunpack.c.l.b16 %v529
  %v562 = vunpack.c.h.b16 %v529
  %v563 = vunpack.c.l.b16 %v530
  %v564 = vunpack.c.h.b16 %v530
  %v565 = vpack.c.b16 %v553, %v549
  %v566 = vpack.c.b16 %v554, %v550
  %v567 = vpack.c.b16 %v555, %v551
  %v568 = vpack.c.b16 %v556, %v552
  %v569 = vpack.c.b16 %v561, %v557
  %v570 = vpack.c.b16 %v562, %v558
  %v571 = vpack.c.b16 %v563, %v559
  %v572 = vpack.c.b16 %v564, %v560
  %vm581 = vcmask 261120
  %v583 = vsel %vm581, %v519, 0
  %v586 = vsel %vm581, %v520, 0
  %v589 = vsel %vm581, %v521, 0
  %v592 = vsel %vm581, %v522, 0
  %594 = vmatpush.bf16.msra.mxu0 0
  %595 = vmatpush.bf16.msra.mxu0 0
  %596 = vmatpush.bf16.msra.mxu0 0
  %597 = vmatpush.bf16.msra.mxu0 0
  %598 = vmatpush.bf16.msra.mxu0 0
  %599 = vmatpush.bf16.msra.mxu0 0
  %600 = vmatpush.bf16.msra.mxu0 %v569
  %601 = vmatpush.bf16.msra.mxu0 %v565
  %602 = vmatmul.bf16.gmra.mxu0 %v583
  %v603 = vpop.f32.mrf.mxu0
  %v604 = vadd.f32 %v533, %v603
  %v605 = vpop.f32.mrf.mxu0
  %v606 = vadd.f32 %v533, %v605
  %607 = vmatmul.bf16.gmra.mxu0 %v586
  %v608 = vpop.f32.mrf.mxu0
  %v609 = vadd.f32 %v533, %v608
  %v610 = vpop.f32.mrf.mxu0
  %v611 = vadd.f32 %v533, %v610
  %612 = vmatmul.bf16.gmra.mxu0 %v589
  %v613 = vpop.f32.mrf.mxu0
  %v614 = vadd.f32 %v533, %v613
  %v615 = vpop.f32.mrf.mxu0
  %v616 = vadd.f32 %v533, %v615
  %617 = vmatmul.bf16.gmra.mxu0 %v592
  %v618 = vpop.f32.mrf.mxu0
  %v619 = vadd.f32 %v533, %v618
  %v620 = vpop.f32.mrf.mxu0
  %v621 = vadd.f32 %v533, %v620
  %622 = vdwg.mxu0
  %623 = vmatpush.bf16.msra.mxu0 0
  %624 = vmatpush.bf16.msra.mxu0 0
  %625 = vmatpush.bf16.msra.mxu0 0
  %626 = vmatpush.bf16.msra.mxu0 0
  %627 = vmatpush.bf16.msra.mxu0 0
  %628 = vmatpush.bf16.msra.mxu0 0
  %629 = vmatpush.bf16.msra.mxu0 %v570
  %630 = vmatpush.bf16.msra.mxu0 %v566
  %631 = vmatmul.bf16.gmra.mxu0 %v583
  %v632 = vpop.f32.mrf.mxu0
  %v633 = vadd.f32 %v534, %v632
  %v634 = vpop.f32.mrf.mxu0
  %v635 = vadd.f32 %v534, %v634
  %636 = vmatmul.bf16.gmra.mxu0 %v586
  %v637 = vpop.f32.mrf.mxu0
  %v638 = vadd.f32 %v534, %v637
  %v639 = vpop.f32.mrf.mxu0
  %v640 = vadd.f32 %v534, %v639
  %641 = vmatmul.bf16.gmra.mxu0 %v589
  %v642 = vpop.f32.mrf.mxu0
  %v643 = vadd.f32 %v534, %v642
  %v644 = vpop.f32.mrf.mxu0
  %v645 = vadd.f32 %v534, %v644
  %646 = vmatmul.bf16.gmra.mxu0 %v592
  %v647 = vpop.f32.mrf.mxu0
  %v648 = vadd.f32 %v534, %v647
  %v649 = vpop.f32.mrf.mxu0
  %v650 = vadd.f32 %v534, %v649
  %651 = vdwg.mxu0
  %652 = vmatpush.bf16.msra.mxu0 0
  %653 = vmatpush.bf16.msra.mxu0 0
  %654 = vmatpush.bf16.msra.mxu0 0
  %655 = vmatpush.bf16.msra.mxu0 0
  %656 = vmatpush.bf16.msra.mxu0 0
  %657 = vmatpush.bf16.msra.mxu0 0
  %658 = vmatpush.bf16.msra.mxu0 %v571
  %659 = vmatpush.bf16.msra.mxu0 %v567
  %660 = vmatmul.bf16.gmra.mxu0 %v583
  %v661 = vpop.f32.mrf.mxu0
  %v662 = vadd.f32 %v535, %v661
  %v663 = vpop.f32.mrf.mxu0
  %v664 = vadd.f32 %v535, %v663
  %665 = vmatmul.bf16.gmra.mxu0 %v586
  %v666 = vpop.f32.mrf.mxu0
  %v667 = vadd.f32 %v535, %v666
  %v668 = vpop.f32.mrf.mxu0
  %v669 = vadd.f32 %v535, %v668
  %670 = vmatmul.bf16.gmra.mxu0 %v589
  %v671 = vpop.f32.mrf.mxu0
  %v672 = vadd.f32 %v535, %v671
  %v673 = vpop.f32.mrf.mxu0
  %v674 = vadd.f32 %v535, %v673
  %675 = vmatmul.bf16.gmra.mxu0 %v592
  %v676 = vpop.f32.mrf.mxu0
  %v677 = vadd.f32 %v535, %v676
  %v678 = vpop.f32.mrf.mxu0
  %v679 = vadd.f32 %v535, %v678
  %680 = vdwg.mxu0
  %681 = vmatpush.bf16.msra.mxu0 0
  %682 = vmatpush.bf16.msra.mxu0 0
  %683 = vmatpush.bf16.msra.mxu0 0
  %684 = vmatpush.bf16.msra.mxu0 0
  %685 = vmatpush.bf16.msra.mxu0 0
  %686 = vmatpush.bf16.msra.mxu0 0
  %687 = vmatpush.bf16.msra.mxu0 %v572
  %688 = vmatpush.bf16.msra.mxu0 %v568
  %689 = vmatmul.bf16.gmra.mxu0 %v583
  %v690 = vpop.f32.mrf.mxu0
  %v691 = vadd.f32 %v536, %v690
  %v692 = vpop.f32.mrf.mxu0
  %v693 = vadd.f32 %v536, %v692
  %694 = vmatmul.bf16.gmra.mxu0 %v586
  %v695 = vpop.f32.mrf.mxu0
  %v696 = vadd.f32 %v536, %v695
  %v697 = vpop.f32.mrf.mxu0
  %v698 = vadd.f32 %v536, %v697
  %699 = vmatmul.bf16.gmra.mxu0 %v589
  %v700 = vpop.f32.mrf.mxu0
  %v701 = vadd.f32 %v536, %v700
  %v702 = vpop.f32.mrf.mxu0
  %v703 = vadd.f32 %v536, %v702
  %704 = vmatmul.bf16.gmra.mxu0 %v592
  %v705 = vpop.f32.mrf.mxu0
  %v706 = vadd.f32 %v536, %v705
  %v707 = vpop.f32.mrf.mxu0
  %v708 = vadd.f32 %v536, %v707
  %709 = vdwg.mxu0
  %v710 = vld [vmem:[%s5] sm:$0xff]
  %v711 = vld [vmem:[%s5 + $0x8] sm:$0xff]
  %v712 = vld [vmem:[%s5 + $0x10] sm:$0xff]
  %v713 = vld [vmem:[%s5 + $0x18] sm:$0xff]
  %v714 = vld [vmem:[%s5 + $0x20] sm:$0xff]
  %v715 = vld [vmem:[%s5 + $0x28] sm:$0xff]
  %v716 = vld [vmem:[%s5 + $0x30] sm:$0xff]
  %v717 = vld [vmem:[%s5 + $0x38] sm:$0xff]
  %v718 = vld [vmem:[%s5 + $0x40] sm:$0xff]
  %v719 = vld [vmem:[%s5 + $0x48] sm:$0xff]
  %v720 = vld [vmem:[%s5 + $0x50] sm:$0xff]
  %v721 = vld [vmem:[%s5 + $0x58] sm:$0xff]
  %v722 = vld [vmem:[%s5 + $0x60] sm:$0xff]
  %v723 = vld [vmem:[%s5 + $0x68] sm:$0xff]
  %v724 = vld [vmem:[%s5 + $0x70] sm:$0xff]
  %v725 = vld [vmem:[%s5 + $0x78] sm:$0xff]
  %v726 = vld [vmem:[%s5 + $0x80] sm:$0xff]
  %v727 = vld [vmem:[%s5 + $0x88] sm:$0xff]
  %v728 = vld [vmem:[%s5 + $0x90] sm:$0xff]
  %v729 = vld [vmem:[%s5 + $0x98] sm:$0xff]
  %v730 = vld [vmem:[%s5 + $0xa0] sm:$0xff]
  %v731 = vld [vmem:[%s5 + $0xa8] sm:$0xff]
  %v732 = vld [vmem:[%s5 + $0xb0] sm:$0xff]
  %v733 = vld [vmem:[%s5 + $0xb8] sm:$0xff]
  %v734 = vld [vmem:[%s5 + $0xc0] sm:$0xff]
  %v735 = vld [vmem:[%s5 + $0xc8] sm:$0xff]
  %v736 = vld [vmem:[%s5 + $0xd0] sm:$0xff]
  %v737 = vld [vmem:[%s5 + $0xd8] sm:$0xff]
  %v738 = vld [vmem:[%s5 + $0xe0] sm:$0xff]
  %v739 = vld [vmem:[%s5 + $0xe8] sm:$0xff]
  %v740 = vld [vmem:[%s5 + $0xf0] sm:$0xff]
  %v741 = vld [vmem:[%s5 + $0xf8] sm:$0xff]
  %v774 = vunpack.c.l.b16 %v710
  %v775 = vunpack.c.h.b16 %v710
  %v776 = vunpack.c.l.b16 %v711
  %v777 = vunpack.c.h.b16 %v711
  %v778 = vunpack.c.l.b16 %v712
  %v779 = vunpack.c.h.b16 %v712
  %v780 = vunpack.c.l.b16 %v713
  %v781 = vunpack.c.h.b16 %v713
  %v782 = vunpack.c.l.b16 %v714
  %v783 = vunpack.c.h.b16 %v714
  %v784 = vunpack.c.l.b16 %v715
  %v785 = vunpack.c.h.b16 %v715
  %v786 = vunpack.c.l.b16 %v716
  %v787 = vunpack.c.h.b16 %v716
  %v788 = vunpack.c.l.b16 %v717
  %v789 = vunpack.c.h.b16 %v717
  %v790 = vunpack.c.l.b16 %v718
  %v791 = vunpack.c.h.b16 %v718
  %v792 = vunpack.c.l.b16 %v719
  %v793 = vunpack.c.h.b16 %v719
  %v794 = vunpack.c.l.b16 %v720
  %v795 = vunpack.c.h.b16 %v720
  %v796 = vunpack.c.l.b16 %v721
  %v797 = vunpack.c.h.b16 %v721
  %v798 = vunpack.c.l.b16 %v722
  %v799 = vunpack.c.h.b16 %v722
  %v800 = vunpack.c.l.b16 %v723
  %v801 = vunpack.c.h.b16 %v723
  %v802 = vunpack.c.l.b16 %v724
  %v803 = vunpack.c.h.b16 %v724
  %v804 = vunpack.c.l.b16 %v725
  %v805 = vunpack.c.h.b16 %v725
  %v806 = vunpack.c.l.b16 %v726
  %v807 = vunpack.c.h.b16 %v726
  %v808 = vunpack.c.l.b16 %v727
  %v809 = vunpack.c.h.b16 %v727
  %v810 = vunpack.c.l.b16 %v728
  %v811 = vunpack.c.h.b16 %v728
  %v812 = vunpack.c.l.b16 %v729
  %v813 = vunpack.c.h.b16 %v729
  %v814 = vunpack.c.l.b16 %v730
  %v815 = vunpack.c.h.b16 %v730
  %v816 = vunpack.c.l.b16 %v731
  %v817 = vunpack.c.h.b16 %v731
  %v818 = vunpack.c.l.b16 %v732
  %v819 = vunpack.c.h.b16 %v732
  %v820 = vunpack.c.l.b16 %v733
  %v821 = vunpack.c.h.b16 %v733
  %v822 = vunpack.c.l.b16 %v734
  %v823 = vunpack.c.h.b16 %v734
  %v824 = vunpack.c.l.b16 %v735
  %v825 = vunpack.c.h.b16 %v735
  %v826 = vunpack.c.l.b16 %v736
  %v827 = vunpack.c.h.b16 %v736
  %v828 = vunpack.c.l.b16 %v737
  %v829 = vunpack.c.h.b16 %v737
  %v830 = vunpack.c.l.b16 %v738
  %v831 = vunpack.c.h.b16 %v738
  %v832 = vunpack.c.l.b16 %v739
  %v833 = vunpack.c.h.b16 %v739
  %v834 = vunpack.c.l.b16 %v740
  %v835 = vunpack.c.h.b16 %v740
  %v836 = vunpack.c.l.b16 %v741
  %v837 = vunpack.c.h.b16 %v741
  %v838 = vpack.c.b16 %v778, %v774
  %v839 = vpack.c.b16 %v779, %v775
  %v840 = vpack.c.b16 %v780, %v776
  %v841 = vpack.c.b16 %v781, %v777
  %v842 = vpack.c.b16 %v786, %v782
  %v843 = vpack.c.b16 %v787, %v783
  %v844 = vpack.c.b16 %v788, %v784
  %v845 = vpack.c.b16 %v789, %v785
  %v846 = vpack.c.b16 %v794, %v790
  %v847 = vpack.c.b16 %v795, %v791
  %v848 = vpack.c.b16 %v796, %v792
  %v849 = vpack.c.b16 %v797, %v793
  %v850 = vpack.c.b16 %v802, %v798
  %v851 = vpack.c.b16 %v803, %v799
  %v852 = vpack.c.b16 %v804, %v800
  %v853 = vpack.c.b16 %v805, %v801
  %v854 = vpack.c.b16 %v810, %v806
  %v855 = vpack.c.b16 %v811, %v807
  %v856 = vpack.c.b16 %v812, %v808
  %v857 = vpack.c.b16 %v813, %v809
  %v858 = vpack.c.b16 %v818, %v814
  %v859 = vpack.c.b16 %v819, %v815
  %v860 = vpack.c.b16 %v820, %v816
  %v861 = vpack.c.b16 %v821, %v817
  %v862 = vpack.c.b16 %v826, %v822
  %v863 = vpack.c.b16 %v827, %v823
  %v864 = vpack.c.b16 %v828, %v824
  %v865 = vpack.c.b16 %v829, %v825
  %v866 = vpack.c.b16 %v834, %v830
  %v867 = vpack.c.b16 %v835, %v831
  %v868 = vpack.c.b16 %v836, %v832
  %v869 = vpack.c.b16 %v837, %v833
  %902 = vmatpush.bf16.msra.mxu0 %v866
  %903 = vmatpush.bf16.msra.mxu0 %v862
  %904 = vmatpush.bf16.msra.mxu0 %v858
  %905 = vmatpush.bf16.msra.mxu0 %v854
  %906 = vmatpush.bf16.msra.mxu0 %v850
  %907 = vmatpush.bf16.msra.mxu0 %v846
  %908 = vmatpush.bf16.msra.mxu0 %v842
  %909 = vmatpush.bf16.msra.mxu0 %v838
  %910 = vmatmul.bf16.gmra.mxu0 0
  %v911 = vpop.f32.mrf.mxu0
  %v912 = vadd.f32 0.0, %v911
  %v913 = vpop.f32.mrf.mxu0
  %914 = vdwg.mxu0
  %915 = vmatpush.bf16.msra.mxu0 %v867
  %916 = vmatpush.bf16.msra.mxu0 %v863
  %917 = vmatpush.bf16.msra.mxu0 %v859
  %918 = vmatpush.bf16.msra.mxu0 %v855
  %919 = vmatpush.bf16.msra.mxu0 %v851
  %920 = vmatpush.bf16.msra.mxu0 %v847
  %921 = vmatpush.bf16.msra.mxu0 %v843
  %922 = vmatpush.bf16.msra.mxu0 %v839
  %923 = vmatmul.bf16.gmra.mxu0 0
  %v924 = vpop.f32.mrf.mxu0
  %v925 = vadd.f32 0.0, %v924
  %v926 = vpop.f32.mrf.mxu0
  %927 = vdwg.mxu0
  %928 = vmatpush.bf16.msra.mxu0 %v868
  %929 = vmatpush.bf16.msra.mxu0 %v864
  %930 = vmatpush.bf16.msra.mxu0 %v860
  %931 = vmatpush.bf16.msra.mxu0 %v856
  %932 = vmatpush.bf16.msra.mxu0 %v852
  %933 = vmatpush.bf16.msra.mxu0 %v848
  %934 = vmatpush.bf16.msra.mxu0 %v844
  %935 = vmatpush.bf16.msra.mxu0 %v840
  %936 = vmatmul.bf16.gmra.mxu0 0
  %v937 = vpop.f32.mrf.mxu0
  %v938 = vadd.f32 0.0, %v937
  %v939 = vpop.f32.mrf.mxu0
  %940 = vdwg.mxu0
  %941 = vmatpush.bf16.msra.mxu0 %v869
  %942 = vmatpush.bf16.msra.mxu0 %v865
  %943 = vmatpush.bf16.msra.mxu0 %v861
  %944 = vmatpush.bf16.msra.mxu0 %v857
  %945 = vmatpush.bf16.msra.mxu0 %v853
  %946 = vmatpush.bf16.msra.mxu0 %v849
  %947 = vmatpush.bf16.msra.mxu0 %v845
  %948 = vmatpush.bf16.msra.mxu0 %v841
  %949 = vmatmul.bf16.gmra.mxu0 0
  %v950 = vpop.f32.mrf.mxu0
  %v951 = vadd.f32 0.0, %v950
  %v952 = vpop.f32.mrf.mxu0
  %953 = vdwg.mxu0
  %v954 = vadd.f32 %v604, %v912
  %v955 = vadd.f32 %v633, %v925
  %v956 = vadd.f32 %v662, %v938
  %v957 = vadd.f32 %v691, %v951
  %v958 = vxor.u32 %v954, 2147483648
  %v959 = vxor.u32 %v955, 2147483648
  %v960 = vxor.u32 %v956, 2147483648
  %v961 = vmul.f32 %v958, 1.442695
  %v962 = vpow.pop %v961
  %v963 = vmul.f32 %v959, 1.442695
  %v964 = vpow.pop %v963
  %v965 = vmul.f32 %v960, 1.442695
  %v966 = vpow.pop %v965
  %v967 = vadd.f32 %v962, 1.0
  %v968 = vadd.f32 %v964, 1.0
  %v969 = vadd.f32 %v966, 1.0
  %v970 = vrcp.pop %v967
  %v971 = vmul.f32 %v967, %v970
  %v972 = vsub.f32 1.0, %v971
  %v973 = vmul.f32 %v970, %v972
  %v974 = vadd.f32 %v970, %v973
  %vm975 = vweird.f32 %v967
  %vm976 = vweird.f32 %v970
  %vm977 = vmor %vm975, %vm976
  %v978 = vsel %vm977, %v970, %v974
  %v979 = vand.u32 2147483647, %v967
  %vm980 = vcmp.eq.f32.partialorder %v979, 8.507059e+37
  %v981 = vand.u32 %v967, 2147483648
  %v982 = vor.u32 1.1754944e-38, %v981
  %v983 = vsel %vm980, %v982, %v978
  %v984 = vmul.f32 1.0, %v983
  %v985 = vrcp.pop %v968
  %v986 = vmul.f32 %v968, %v985
  %v987 = vsub.f32 1.0, %v986
  %v988 = vmul.f32 %v985, %v987
  %v989 = vadd.f32 %v985, %v988
  %vm990 = vweird.f32 %v968
  %vm991 = vweird.f32 %v985
  %vm992 = vmor %vm990, %vm991
  %v993 = vsel %vm992, %v985, %v989
  %v994 = vand.u32 2147483647, %v968
  %vm995 = vcmp.eq.f32.partialorder %v994, 8.507059e+37
  %v996 = vand.u32 %v968, 2147483648
  %v997 = vor.u32 1.1754944e-38, %v996
  %v998 = vsel %vm995, %v997, %v993
  %v999 = vmul.f32 1.0, %v998
  %v1000 = vrcp.pop %v969
  %v1001 = vmul.f32 %v969, %v1000
  %v1002 = vsub.f32 1.0, %v1001
  %v1003 = vmul.f32 %v1000, %v1002
  %v1004 = vadd.f32 %v1000, %v1003
  %vm1005 = vweird.f32 %v969
  %vm1006 = vweird.f32 %v1000
  %vm1007 = vmor %vm1005, %vm1006
  %v1008 = vsel %vm1007, %v1000, %v1004
  %v1009 = vand.u32 2147483647, %v969
  %vm1010 = vcmp.eq.f32.partialorder %v1009, 8.507059e+37
  %v1011 = vand.u32 %v969, 2147483648
  %v1012 = vor.u32 1.1754944e-38, %v1011
  %v1013 = vsel %vm1010, %v1012, %v1008
  %v1014 = vmul.f32 1.0, %v1013
  %v1015 = vtanh.pop %v957
  %v1016 = vmul.f32 %v999, 0.0
  %v1017 = vmul.f32 %v984, %v1015
  %v1018 = vadd.f32 %v1016, %v1017
  %v1019 = vtanh.pop %v1018
  %v1020 = vmul.f32 %v1014, %v1019
  %v1021 = vpack.c.bf16 %v1020, %v1020
  %1022 = vmatpush.bf16.msra.mxu0 %v866
  %1023 = vmatpush.bf16.msra.mxu0 %v862
  %1024 = vmatpush.bf16.msra.mxu0 %v858
  %1025 = vmatpush.bf16.msra.mxu0 %v854
  %1026 = vmatpush.bf16.msra.mxu0 %v850
  %1027 = vmatpush.bf16.msra.mxu0 %v846
  %1028 = vmatpush.bf16.msra.mxu0 %v842
  %1029 = vmatpush.bf16.msra.mxu0 %v838
  %1030 = vmatmul.bf16.gmra.mxu0 %v1021
  %v1031 = vpop.f32.mrf.mxu0
  %v1032 = vadd.f32 0.0, %v1031
  %v1033 = vpop.f32.mrf.mxu0
  %1034 = vdwg.mxu0
  %1035 = vmatpush.bf16.msra.mxu0 %v867
  %1036 = vmatpush.bf16.msra.mxu0 %v863
  %1037 = vmatpush.bf16.msra.mxu0 %v859
  %1038 = vmatpush.bf16.msra.mxu0 %v855
  %1039 = vmatpush.bf16.msra.mxu0 %v851
  %1040 = vmatpush.bf16.msra.mxu0 %v847
  %1041 = vmatpush.bf16.msra.mxu0 %v843
  %1042 = vmatpush.bf16.msra.mxu0 %v839
  %1043 = vmatmul.bf16.gmra.mxu0 %v1021
  %v1044 = vpop.f32.mrf.mxu0
  %v1045 = vadd.f32 0.0, %v1044
  %v1046 = vpop.f32.mrf.mxu0
  %1047 = vdwg.mxu0
  %1048 = vmatpush.bf16.msra.mxu0 %v868
  %1049 = vmatpush.bf16.msra.mxu0 %v864
  %1050 = vmatpush.bf16.msra.mxu0 %v860
  %1051 = vmatpush.bf16.msra.mxu0 %v856
  %1052 = vmatpush.bf16.msra.mxu0 %v852
  %1053 = vmatpush.bf16.msra.mxu0 %v848
  %1054 = vmatpush.bf16.msra.mxu0 %v844
  %1055 = vmatpush.bf16.msra.mxu0 %v840
  %1056 = vmatmul.bf16.gmra.mxu0 %v1021
  %v1057 = vpop.f32.mrf.mxu0
  %v1058 = vadd.f32 0.0, %v1057
  %v1059 = vpop.f32.mrf.mxu0
  %1060 = vdwg.mxu0
  %1061 = vmatpush.bf16.msra.mxu0 %v869
  %1062 = vmatpush.bf16.msra.mxu0 %v865
  %1063 = vmatpush.bf16.msra.mxu0 %v861
  %1064 = vmatpush.bf16.msra.mxu0 %v857
  %1065 = vmatpush.bf16.msra.mxu0 %v853
  %1066 = vmatpush.bf16.msra.mxu0 %v849
  %1067 = vmatpush.bf16.msra.mxu0 %v845
  %1068 = vmatpush.bf16.msra.mxu0 %v841
  %1069 = vmatmul.bf16.gmra.mxu0 %v1021
  %v1070 = vpop.f32.mrf.mxu0
  %v1071 = vadd.f32 0.0, %v1070
  %v1072 = vpop.f32.mrf.mxu0
  %1073 = vdwg.mxu0
  %v1074 = vadd.f32 %v606, %v1032
  %v1075 = vadd.f32 %v635, %v1045
  %v1076 = vadd.f32 %v664, %v1058
  %v1077 = vadd.f32 %v693, %v1071
  %v1078 = vxor.u32 %v1074, 2147483648
  %v1079 = vxor.u32 %v1075, 2147483648
  %v1080 = vxor.u32 %v1076, 2147483648
  %v1081 = vmul.f32 %v1078, 1.442695
  %v1082 = vpow.pop %v1081
  %v1083 = vmul.f32 %v1079, 1.442695
  %v1084 = vpow.pop %v1083
  %v1085 = vmul.f32 %v1080, 1.442695
  %v1086 = vpow.pop %v1085
  %v1087 = vadd.f32 %v1082, 1.0
  %v1088 = vadd.f32 %v1084, 1.0
  %v1089 = vadd.f32 %v1086, 1.0
  %v1090 = vrcp.pop %v1087
  %v1091 = vmul.f32 %v1087, %v1090
  %v1092 = vsub.f32 1.0, %v1091
  %v1093 = vmul.f32 %v1090, %v1092
  %v1094 = vadd.f32 %v1090, %v1093
  %vm1095 = vweird.f32 %v1087
  %vm1096 = vweird.f32 %v1090
  %vm1097 = vmor %vm1095, %vm1096
  %v1098 = vsel %vm1097, %v1090, %v1094
  %v1099 = vand.u32 2147483647, %v1087
  %vm1100 = vcmp.eq.f32.partialorder %v1099, 8.507059e+37
  %v1101 = vand.u32 %v1087, 2147483648
  %v1102 = vor.u32 1.1754944e-38, %v1101
  %v1103 = vsel %vm1100, %v1102, %v1098
  %v1104 = vmul.f32 1.0, %v1103
  %v1105 = vrcp.pop %v1088
  %v1106 = vmul.f32 %v1088, %v1105
  %v1107 = vsub.f32 1.0, %v1106
  %v1108 = vmul.f32 %v1105, %v1107
  %v1109 = vadd.f32 %v1105, %v1108
  %vm1110 = vweird.f32 %v1088
  %vm1111 = vweird.f32 %v1105
  %vm1112 = vmor %vm1110, %vm1111
  %v1113 = vsel %vm1112, %v1105, %v1109
  %v1114 = vand.u32 2147483647, %v1088
  %vm1115 = vcmp.eq.f32.partialorder %v1114, 8.507059e+37
  %v1116 = vand.u32 %v1088, 2147483648
  %v1117 = vor.u32 1.1754944e-38, %v1116
  %v1118 = vsel %vm1115, %v1117, %v1113
  %v1119 = vmul.f32 1.0, %v1118
  %v1120 = vrcp.pop %v1089
  %v1121 = vmul.f32 %v1089, %v1120
  %v1122 = vsub.f32 1.0, %v1121
  %v1123 = vmul.f32 %v1120, %v1122
  %v1124 = vadd.f32 %v1120, %v1123
  %vm1125 = vweird.f32 %v1089
  %vm1126 = vweird.f32 %v1120
  %vm1127 = vmor %vm1125, %vm1126
  %v1128 = vsel %vm1127, %v1120, %v1124
  %v1129 = vand.u32 2147483647, %v1089
  %vm1130 = vcmp.eq.f32.partialorder %v1129, 8.507059e+37
  %v1131 = vand.u32 %v1089, 2147483648
  %v1132 = vor.u32 1.1754944e-38, %v1131
  %v1133 = vsel %vm1130, %v1132, %v1128
  %v1134 = vmul.f32 1.0, %v1133
  %v1135 = vtanh.pop %v1077
  %v1136 = vmul.f32 %v1119, %v1018
  %v1137 = vmul.f32 %v1104, %v1135
  %v1138 = vadd.f32 %v1136, %v1137
  %v1139 = vtanh.pop %v1138
  %v1140 = vmul.f32 %v1134, %v1139
  %v1141 = vpack.c.bf16 %v1140, %v1140
  %1142 = vmatpush.bf16.msra.mxu0 %v866
  %1143 = vmatpush.bf16.msra.mxu0 %v862
  %1144 = vmatpush.bf16.msra.mxu0 %v858
  %1145 = vmatpush.bf16.msra.mxu0 %v854
  %1146 = vmatpush.bf16.msra.mxu0 %v850
  %1147 = vmatpush.bf16.msra.mxu0 %v846
  %1148 = vmatpush.bf16.msra.mxu0 %v842
  %1149 = vmatpush.bf16.msra.mxu0 %v838
  %1150 = vmatmul.bf16.gmra.mxu0 %v1141
  %v1151 = vpop.f32.mrf.mxu0
  %v1152 = vadd.f32 0.0, %v1151
  %v1153 = vpop.f32.mrf.mxu0
  %1154 = vdwg.mxu0
  %1155 = vmatpush.bf16.msra.mxu0 %v867
  %1156 = vmatpush.bf16.msra.mxu0 %v863
  %1157 = vmatpush.bf16.msra.mxu0 %v859
  %1158 = vmatpush.bf16.msra.mxu0 %v855
  %1159 = vmatpush.bf16.msra.mxu0 %v851
  %1160 = vmatpush.bf16.msra.mxu0 %v847
  %1161 = vmatpush.bf16.msra.mxu0 %v843
  %1162 = vmatpush.bf16.msra.mxu0 %v839
  %1163 = vmatmul.bf16.gmra.mxu0 %v1141
  %v1164 = vpop.f32.mrf.mxu0
  %v1165 = vadd.f32 0.0, %v1164
  %v1166 = vpop.f32.mrf.mxu0
  %1167 = vdwg.mxu0
  %1168 = vmatpush.bf16.msra.mxu0 %v868
  %1169 = vmatpush.bf16.msra.mxu0 %v864
  %1170 = vmatpush.bf16.msra.mxu0 %v860
  %1171 = vmatpush.bf16.msra.mxu0 %v856
  %1172 = vmatpush.bf16.msra.mxu0 %v852
  %1173 = vmatpush.bf16.msra.mxu0 %v848
  %1174 = vmatpush.bf16.msra.mxu0 %v844
  %1175 = vmatpush.bf16.msra.mxu0 %v840
  %1176 = vmatmul.bf16.gmra.mxu0 %v1141
  %v1177 = vpop.f32.mrf.mxu0
  %v1178 = vadd.f32 0.0, %v1177
  %v1179 = vpop.f32.mrf.mxu0
  %1180 = vdwg.mxu0
  %1181 = vmatpush.bf16.msra.mxu0 %v869
  %1182 = vmatpush.bf16.msra.mxu0 %v865
  %1183 = vmatpush.bf16.msra.mxu0 %v861
  %1184 = vmatpush.bf16.msra.mxu0 %v857
  %1185 = vmatpush.bf16.msra.mxu0 %v853
  %1186 = vmatpush.bf16.msra.mxu0 %v849
  %1187 = vmatpush.bf16.msra.mxu0 %v845
  %1188 = vmatpush.bf16.msra.mxu0 %v841
  %1189 = vmatmul.bf16.gmra.mxu0 %v1141
  %v1190 = vpop.f32.mrf.mxu0
  %v1191 = vadd.f32 0.0, %v1190
  %v1192 = vpop.f32.mrf.mxu0
  %1193 = vdwg.mxu0
  %v1194 = vadd.f32 %v609, %v1152
  %v1195 = vadd.f32 %v638, %v1165
  %v1196 = vadd.f32 %v667, %v1178
  %v1197 = vadd.f32 %v696, %v1191
  %v1198 = vxor.u32 %v1194, 2147483648
  %v1199 = vxor.u32 %v1195, 2147483648
  %v1200 = vxor.u32 %v1196, 2147483648
  %v1201 = vmul.f32 %v1198, 1.442695
  %v1202 = vpow.pop %v1201
  %v1203 = vmul.f32 %v1199, 1.442695
  %v1204 = vpow.pop %v1203
  %v1205 = vmul.f32 %v1200, 1.442695
  %v1206 = vpow.pop %v1205
  %v1207 = vadd.f32 %v1202, 1.0
  %v1208 = vadd.f32 %v1204, 1.0
  %v1209 = vadd.f32 %v1206, 1.0
  %v1210 = vrcp.pop %v1207
  %v1211 = vmul.f32 %v1207, %v1210
  %v1212 = vsub.f32 1.0, %v1211
  %v1213 = vmul.f32 %v1210, %v1212
  %v1214 = vadd.f32 %v1210, %v1213
  %vm1215 = vweird.f32 %v1207
  %vm1216 = vweird.f32 %v1210
  %vm1217 = vmor %vm1215, %vm1216
  %v1218 = vsel %vm1217, %v1210, %v1214
  %v1219 = vand.u32 2147483647, %v1207
  %vm1220 = vcmp.eq.f32.partialorder %v1219, 8.507059e+37
  %v1221 = vand.u32 %v1207, 2147483648
  %v1222 = vor.u32 1.1754944e-38, %v1221
  %v1223 = vsel %vm1220, %v1222, %v1218
  %v1224 = vmul.f32 1.0, %v1223
  %v1225 = vrcp.pop %v1208
  %v1226 = vmul.f32 %v1208, %v1225
  %v1227 = vsub.f32 1.0, %v1226
  %v1228 = vmul.f32 %v1225, %v1227
  %v1229 = vadd.f32 %v1225, %v1228
  %vm1230 = vweird.f32 %v1208
  %vm1231 = vweird.f32 %v1225
  %vm1232 = vmor %vm1230, %vm1231
  %v1233 = vsel %vm1232, %v1225, %v1229
  %v1234 = vand.u32 2147483647, %v1208
  %vm1235 = vcmp.eq.f32.partialorder %v1234, 8.507059e+37
  %v1236 = vand.u32 %v1208, 2147483648
  %v1237 = vor.u32 1.1754944e-38, %v1236
  %v1238 = vsel %vm1235, %v1237, %v1233
  %v1239 = vmul.f32 1.0, %v1238
  %v1240 = vrcp.pop %v1209
  %v1241 = vmul.f32 %v1209, %v1240
  %v1242 = vsub.f32 1.0, %v1241
  %v1243 = vmul.f32 %v1240, %v1242
  %v1244 = vadd.f32 %v1240, %v1243
  %vm1245 = vweird.f32 %v1209
  %vm1246 = vweird.f32 %v1240
  %vm1247 = vmor %vm1245, %vm1246
  %v1248 = vsel %vm1247, %v1240, %v1244
  %v1249 = vand.u32 2147483647, %v1209
  %vm1250 = vcmp.eq.f32.partialorder %v1249, 8.507059e+37
  %v1251 = vand.u32 %v1209, 2147483648
  %v1252 = vor.u32 1.1754944e-38, %v1251
  %v1253 = vsel %vm1250, %v1252, %v1248
  %v1254 = vmul.f32 1.0, %v1253
  %v1255 = vtanh.pop %v1197
  %v1256 = vmul.f32 %v1239, %v1138
  %v1257 = vmul.f32 %v1224, %v1255
  %v1258 = vadd.f32 %v1256, %v1257
  %v1259 = vtanh.pop %v1258
  %v1260 = vmul.f32 %v1254, %v1259
  %v1261 = vpack.c.bf16 %v1260, %v1260
  %1262 = vmatpush.bf16.msra.mxu0 %v866
  %1263 = vmatpush.bf16.msra.mxu0 %v862
  %1264 = vmatpush.bf16.msra.mxu0 %v858
  %1265 = vmatpush.bf16.msra.mxu0 %v854
  %1266 = vmatpush.bf16.msra.mxu0 %v850
  %1267 = vmatpush.bf16.msra.mxu0 %v846
  %1268 = vmatpush.bf16.msra.mxu0 %v842
  %1269 = vmatpush.bf16.msra.mxu0 %v838
  %1270 = vmatmul.bf16.gmra.mxu0 %v1261
  %v1271 = vpop.f32.mrf.mxu0
  %v1272 = vadd.f32 0.0, %v1271
  %v1273 = vpop.f32.mrf.mxu0
  %1274 = vdwg.mxu0
  %1275 = vmatpush.bf16.msra.mxu0 %v867
  %1276 = vmatpush.bf16.msra.mxu0 %v863
  %1277 = vmatpush.bf16.msra.mxu0 %v859
  %1278 = vmatpush.bf16.msra.mxu0 %v855
  %1279 = vmatpush.bf16.msra.mxu0 %v851
  %1280 = vmatpush.bf16.msra.mxu0 %v847
  %1281 = vmatpush.bf16.msra.mxu0 %v843
  %1282 = vmatpush.bf16.msra.mxu0 %v839
  %1283 = vmatmul.bf16.gmra.mxu0 %v1261
  %v1284 = vpop.f32.mrf.mxu0
  %v1285 = vadd.f32 0.0, %v1284
  %v1286 = vpop.f32.mrf.mxu0
  %1287 = vdwg.mxu0
  %1288 = vmatpush.bf16.msra.mxu0 %v868
  %1289 = vmatpush.bf16.msra.mxu0 %v864
  %1290 = vmatpush.bf16.msra.mxu0 %v860
  %1291 = vmatpush.bf16.msra.mxu0 %v856
  %1292 = vmatpush.bf16.msra.mxu0 %v852
  %1293 = vmatpush.bf16.msra.mxu0 %v848
  %1294 = vmatpush.bf16.msra.mxu0 %v844
  %1295 = vmatpush.bf16.msra.mxu0 %v840
  %1296 = vmatmul.bf16.gmra.mxu0 %v1261
  %v1297 = vpop.f32.mrf.mxu0
  %v1298 = vadd.f32 0.0, %v1297
  %v1299 = vpop.f32.mrf.mxu0
  %1300 = vdwg.mxu0
  %1301 = vmatpush.bf16.msra.mxu0 %v869
  %1302 = vmatpush.bf16.msra.mxu0 %v865
  %1303 = vmatpush.bf16.msra.mxu0 %v861
  %1304 = vmatpush.bf16.msra.mxu0 %v857
  %1305 = vmatpush.bf16.msra.mxu0 %v853
  %1306 = vmatpush.bf16.msra.mxu0 %v849
  %1307 = vmatpush.bf16.msra.mxu0 %v845
  %1308 = vmatpush.bf16.msra.mxu0 %v841
  %1309 = vmatmul.bf16.gmra.mxu0 %v1261
  %v1310 = vpop.f32.mrf.mxu0
  %v1311 = vadd.f32 0.0, %v1310
  %v1312 = vpop.f32.mrf.mxu0
  %1313 = vdwg.mxu0
  %v1314 = vadd.f32 %v611, %v1272
  %v1315 = vadd.f32 %v640, %v1285
  %v1316 = vadd.f32 %v669, %v1298
  %v1317 = vadd.f32 %v698, %v1311
  %v1318 = vxor.u32 %v1314, 2147483648
  %v1319 = vxor.u32 %v1315, 2147483648
  %v1320 = vxor.u32 %v1316, 2147483648
  %v1321 = vmul.f32 %v1318, 1.442695
  %v1322 = vpow.pop %v1321
  %v1323 = vmul.f32 %v1319, 1.442695
  %v1324 = vpow.pop %v1323
  %v1325 = vmul.f32 %v1320, 1.442695
  %v1326 = vpow.pop %v1325
  %v1327 = vadd.f32 %v1322, 1.0
  %v1328 = vadd.f32 %v1324, 1.0
  %v1329 = vadd.f32 %v1326, 1.0
  %v1330 = vrcp.pop %v1327
  %v1331 = vmul.f32 %v1327, %v1330
  %v1332 = vsub.f32 1.0, %v1331
  %v1333 = vmul.f32 %v1330, %v1332
  %v1334 = vadd.f32 %v1330, %v1333
  %vm1335 = vweird.f32 %v1327
  %vm1336 = vweird.f32 %v1330
  %vm1337 = vmor %vm1335, %vm1336
  %v1338 = vsel %vm1337, %v1330, %v1334
  %v1339 = vand.u32 2147483647, %v1327
  %vm1340 = vcmp.eq.f32.partialorder %v1339, 8.507059e+37
  %v1341 = vand.u32 %v1327, 2147483648
  %v1342 = vor.u32 1.1754944e-38, %v1341
  %v1343 = vsel %vm1340, %v1342, %v1338
  %v1344 = vmul.f32 1.0, %v1343
  %v1345 = vrcp.pop %v1328
  %v1346 = vmul.f32 %v1328, %v1345
  %v1347 = vsub.f32 1.0, %v1346
  %v1348 = vmul.f32 %v1345, %v1347
  %v1349 = vadd.f32 %v1345, %v1348
  %vm1350 = vweird.f32 %v1328
  %vm1351 = vweird.f32 %v1345
  %vm1352 = vmor %vm1350, %vm1351
  %v1353 = vsel %vm1352, %v1345, %v1349
  %v1354 = vand.u32 2147483647, %v1328
  %vm1355 = vcmp.eq.f32.partialorder %v1354, 8.507059e+37
  %v1356 = vand.u32 %v1328, 2147483648
  %v1357 = vor.u32 1.1754944e-38, %v1356
  %v1358 = vsel %vm1355, %v1357, %v1353
  %v1359 = vmul.f32 1.0, %v1358
  %v1360 = vrcp.pop %v1329
  %v1361 = vmul.f32 %v1329, %v1360
  %v1362 = vsub.f32 1.0, %v1361
  %v1363 = vmul.f32 %v1360, %v1362
  %v1364 = vadd.f32 %v1360, %v1363
  %vm1365 = vweird.f32 %v1329
  %vm1366 = vweird.f32 %v1360
  %vm1367 = vmor %vm1365, %vm1366
  %v1368 = vsel %vm1367, %v1360, %v1364
  %v1369 = vand.u32 2147483647, %v1329
  %vm1370 = vcmp.eq.f32.partialorder %v1369, 8.507059e+37
  %v1371 = vand.u32 %v1329, 2147483648
  %v1372 = vor.u32 1.1754944e-38, %v1371
  %v1373 = vsel %vm1370, %v1372, %v1368
  %v1374 = vmul.f32 1.0, %v1373
  %v1375 = vtanh.pop %v1317
  %v1376 = vmul.f32 %v1359, %v1258
  %v1377 = vmul.f32 %v1344, %v1375
  %v1378 = vadd.f32 %v1376, %v1377
  %v1379 = vtanh.pop %v1378
  %v1380 = vmul.f32 %v1374, %v1379
  %v1381 = vpack.c.bf16 %v1380, %v1380
  %1382 = vmatpush.bf16.msra.mxu0 %v866
  %1383 = vmatpush.bf16.msra.mxu0 %v862
  %1384 = vmatpush.bf16.msra.mxu0 %v858
  %1385 = vmatpush.bf16.msra.mxu0 %v854
  %1386 = vmatpush.bf16.msra.mxu0 %v850
  %1387 = vmatpush.bf16.msra.mxu0 %v846
  %1388 = vmatpush.bf16.msra.mxu0 %v842
  %1389 = vmatpush.bf16.msra.mxu0 %v838
  %1390 = vmatmul.bf16.gmra.mxu0 %v1381
  %v1391 = vpop.f32.mrf.mxu0
  %v1392 = vadd.f32 0.0, %v1391
  %v1393 = vpop.f32.mrf.mxu0
  %1394 = vdwg.mxu0
  %1395 = vmatpush.bf16.msra.mxu0 %v867
  %1396 = vmatpush.bf16.msra.mxu0 %v863
  %1397 = vmatpush.bf16.msra.mxu0 %v859
  %1398 = vmatpush.bf16.msra.mxu0 %v855
  %1399 = vmatpush.bf16.msra.mxu0 %v851
  %1400 = vmatpush.bf16.msra.mxu0 %v847
  %1401 = vmatpush.bf16.msra.mxu0 %v843
  %1402 = vmatpush.bf16.msra.mxu0 %v839
  %1403 = vmatmul.bf16.gmra.mxu0 %v1381
  %v1404 = vpop.f32.mrf.mxu0
  %v1405 = vadd.f32 0.0, %v1404
  %v1406 = vpop.f32.mrf.mxu0
  %1407 = vdwg.mxu0
  %1408 = vmatpush.bf16.msra.mxu0 %v868
  %1409 = vmatpush.bf16.msra.mxu0 %v864
  %1410 = vmatpush.bf16.msra.mxu0 %v860
  %1411 = vmatpush.bf16.msra.mxu0 %v856
  %1412 = vmatpush.bf16.msra.mxu0 %v852
  %1413 = vmatpush.bf16.msra.mxu0 %v848
  %1414 = vmatpush.bf16.msra.mxu0 %v844
  %1415 = vmatpush.bf16.msra.mxu0 %v840
  %1416 = vmatmul.bf16.gmra.mxu0 %v1381
  %v1417 = vpop.f32.mrf.mxu0
  %v1418 = vadd.f32 0.0, %v1417
  %v1419 = vpop.f32.mrf.mxu0
  %1420 = vdwg.mxu0
  %1421 = vmatpush.bf16.msra.mxu0 %v869
  %1422 = vmatpush.bf16.msra.mxu0 %v865
  %1423 = vmatpush.bf16.msra.mxu0 %v861
  %1424 = vmatpush.bf16.msra.mxu0 %v857
  %1425 = vmatpush.bf16.msra.mxu0 %v853
  %1426 = vmatpush.bf16.msra.mxu0 %v849
  %1427 = vmatpush.bf16.msra.mxu0 %v845
  %1428 = vmatpush.bf16.msra.mxu0 %v841
  %1429 = vmatmul.bf16.gmra.mxu0 %v1381
  %v1430 = vpop.f32.mrf.mxu0
  %v1431 = vadd.f32 0.0, %v1430
  %v1432 = vpop.f32.mrf.mxu0
  %1433 = vdwg.mxu0
  %v1434 = vadd.f32 %v614, %v1392
  %v1435 = vadd.f32 %v643, %v1405
  %v1436 = vadd.f32 %v672, %v1418
  %v1437 = vadd.f32 %v701, %v1431
  %v1438 = vxor.u32 %v1434, 2147483648
  %v1439 = vxor.u32 %v1435, 2147483648
  %v1440 = vxor.u32 %v1436, 2147483648
  %v1441 = vmul.f32 %v1438, 1.442695
  %v1442 = vpow.pop %v1441
  %v1443 = vmul.f32 %v1439, 1.442695
  %v1444 = vpow.pop %v1443
  %v1445 = vmul.f32 %v1440, 1.442695
  %v1446 = vpow.pop %v1445
  %v1447 = vadd.f32 %v1442, 1.0
  %v1448 = vadd.f32 %v1444, 1.0
  %v1449 = vadd.f32 %v1446, 1.0
  %v1450 = vrcp.pop %v1447
  %v1451 = vmul.f32 %v1447, %v1450
  %v1452 = vsub.f32 1.0, %v1451
  %v1453 = vmul.f32 %v1450, %v1452
  %v1454 = vadd.f32 %v1450, %v1453
  %vm1455 = vweird.f32 %v1447
  %vm1456 = vweird.f32 %v1450
  %vm1457 = vmor %vm1455, %vm1456
  %v1458 = vsel %vm1457, %v1450, %v1454
  %v1459 = vand.u32 2147483647, %v1447
  %vm1460 = vcmp.eq.f32.partialorder %v1459, 8.507059e+37
  %v1461 = vand.u32 %v1447, 2147483648
  %v1462 = vor.u32 1.1754944e-38, %v1461
  %v1463 = vsel %vm1460, %v1462, %v1458
  %v1464 = vmul.f32 1.0, %v1463
  %v1465 = vrcp.pop %v1448
  %v1466 = vmul.f32 %v1448, %v1465
  %v1467 = vsub.f32 1.0, %v1466
  %v1468 = vmul.f32 %v1465, %v1467
  %v1469 = vadd.f32 %v1465, %v1468
  %vm1470 = vweird.f32 %v1448
  %vm1471 = vweird.f32 %v1465
  %vm1472 = vmor %vm1470, %vm1471
  %v1473 = vsel %vm1472, %v1465, %v1469
  %v1474 = vand.u32 2147483647, %v1448
  %vm1475 = vcmp.eq.f32.partialorder %v1474, 8.507059e+37
  %v1476 = vand.u32 %v1448, 2147483648
  %v1477 = vor.u32 1.1754944e-38, %v1476
  %v1478 = vsel %vm1475, %v1477, %v1473
  %v1479 = vmul.f32 1.0, %v1478
  %v1480 = vrcp.pop %v1449
  %v1481 = vmul.f32 %v1449, %v1480
  %v1482 = vsub.f32 1.0, %v1481
  %v1483 = vmul.f32 %v1480, %v1482
  %v1484 = vadd.f32 %v1480, %v1483
  %vm1485 = vweird.f32 %v1449
  %vm1486 = vweird.f32 %v1480
  %vm1487 = vmor %vm1485, %vm1486
  %v1488 = vsel %vm1487, %v1480, %v1484
  %v1489 = vand.u32 2147483647, %v1449
  %vm1490 = vcmp.eq.f32.partialorder %v1489, 8.507059e+37
  %v1491 = vand.u32 %v1449, 2147483648
  %v1492 = vor.u32 1.1754944e-38, %v1491
  %v1493 = vsel %vm1490, %v1492, %v1488
  %v1494 = vmul.f32 1.0, %v1493
  %v1495 = vtanh.pop %v1437
  %v1496 = vmul.f32 %v1479, %v1378
  %v1497 = vmul.f32 %v1464, %v1495
  %v1498 = vadd.f32 %v1496, %v1497
  %v1499 = vtanh.pop %v1498
  %v1500 = vmul.f32 %v1494, %v1499
  %v1501 = vpack.c.bf16 %v1500, %v1500
  %1502 = vmatpush.bf16.msra.mxu0 %v866
  %1503 = vmatpush.bf16.msra.mxu0 %v862
  %1504 = vmatpush.bf16.msra.mxu0 %v858
  %1505 = vmatpush.bf16.msra.mxu0 %v854
  %1506 = vmatpush.bf16.msra.mxu0 %v850
  %1507 = vmatpush.bf16.msra.mxu0 %v846
  %1508 = vmatpush.bf16.msra.mxu0 %v842
  %1509 = vmatpush.bf16.msra.mxu0 %v838
  %1510 = vmatmul.bf16.gmra.mxu0 %v1501
  %v1511 = vpop.f32.mrf.mxu0
  %v1512 = vadd.f32 0.0, %v1511
  %v1513 = vpop.f32.mrf.mxu0
  %1514 = vdwg.mxu0
  %1515 = vmatpush.bf16.msra.mxu0 %v867
  %1516 = vmatpush.bf16.msra.mxu0 %v863
  %1517 = vmatpush.bf16.msra.mxu0 %v859
  %1518 = vmatpush.bf16.msra.mxu0 %v855
  %1519 = vmatpush.bf16.msra.mxu0 %v851
  %1520 = vmatpush.bf16.msra.mxu0 %v847
  %1521 = vmatpush.bf16.msra.mxu0 %v843
  %1522 = vmatpush.bf16.msra.mxu0 %v839
  %1523 = vmatmul.bf16.gmra.mxu0 %v1501
  %v1524 = vpop.f32.mrf.mxu0
  %v1525 = vadd.f32 0.0, %v1524
  %v1526 = vpop.f32.mrf.mxu0
  %1527 = vdwg.mxu0
  %1528 = vmatpush.bf16.msra.mxu0 %v868
  %1529 = vmatpush.bf16.msra.mxu0 %v864
  %1530 = vmatpush.bf16.msra.mxu0 %v860
  %1531 = vmatpush.bf16.msra.mxu0 %v856
  %1532 = vmatpush.bf16.msra.mxu0 %v852
  %1533 = vmatpush.bf16.msra.mxu0 %v848
  %1534 = vmatpush.bf16.msra.mxu0 %v844
  %1535 = vmatpush.bf16.msra.mxu0 %v840
  %1536 = vmatmul.bf16.gmra.mxu0 %v1501
  %v1537 = vpop.f32.mrf.mxu0
  %v1538 = vadd.f32 0.0, %v1537
  %v1539 = vpop.f32.mrf.mxu0
  %1540 = vdwg.mxu0
  %1541 = vmatpush.bf16.msra.mxu0 %v869
  %1542 = vmatpush.bf16.msra.mxu0 %v865
  %1543 = vmatpush.bf16.msra.mxu0 %v861
  %1544 = vmatpush.bf16.msra.mxu0 %v857
  %1545 = vmatpush.bf16.msra.mxu0 %v853
  %1546 = vmatpush.bf16.msra.mxu0 %v849
  %1547 = vmatpush.bf16.msra.mxu0 %v845
  %1548 = vmatpush.bf16.msra.mxu0 %v841
  %1549 = vmatmul.bf16.gmra.mxu0 %v1501
  %v1550 = vpop.f32.mrf.mxu0
  %v1551 = vadd.f32 0.0, %v1550
  %v1552 = vpop.f32.mrf.mxu0
  %1553 = vdwg.mxu0
  %v1554 = vadd.f32 %v616, %v1512
  %v1555 = vadd.f32 %v645, %v1525
  %v1556 = vadd.f32 %v674, %v1538
  %v1557 = vadd.f32 %v703, %v1551
  %v1558 = vxor.u32 %v1554, 2147483648
  %v1559 = vxor.u32 %v1555, 2147483648
  %v1560 = vxor.u32 %v1556, 2147483648
  %v1561 = vmul.f32 %v1558, 1.442695
  %v1562 = vpow.pop %v1561
  %v1563 = vmul.f32 %v1559, 1.442695
  %v1564 = vpow.pop %v1563
  %v1565 = vmul.f32 %v1560, 1.442695
  %v1566 = vpow.pop %v1565
  %v1567 = vadd.f32 %v1562, 1.0
  %v1568 = vadd.f32 %v1564, 1.0
  %v1569 = vadd.f32 %v1566, 1.0
  %v1570 = vrcp.pop %v1567
  %v1571 = vmul.f32 %v1567, %v1570
  %v1572 = vsub.f32 1.0, %v1571
  %v1573 = vmul.f32 %v1570, %v1572
  %v1574 = vadd.f32 %v1570, %v1573
  %vm1575 = vweird.f32 %v1567
  %vm1576 = vweird.f32 %v1570
  %vm1577 = vmor %vm1575, %vm1576
  %v1578 = vsel %vm1577, %v1570, %v1574
  %v1579 = vand.u32 2147483647, %v1567
  %vm1580 = vcmp.eq.f32.partialorder %v1579, 8.507059e+37
  %v1581 = vand.u32 %v1567, 2147483648
  %v1582 = vor.u32 1.1754944e-38, %v1581
  %v1583 = vsel %vm1580, %v1582, %v1578
  %v1584 = vmul.f32 1.0, %v1583
  %v1585 = vrcp.pop %v1568
  %v1586 = vmul.f32 %v1568, %v1585
  %v1587 = vsub.f32 1.0, %v1586
  %v1588 = vmul.f32 %v1585, %v1587
  %v1589 = vadd.f32 %v1585, %v1588
  %vm1590 = vweird.f32 %v1568
  %vm1591 = vweird.f32 %v1585
  %vm1592 = vmor %vm1590, %vm1591
  %v1593 = vsel %vm1592, %v1585, %v1589
  %v1594 = vand.u32 2147483647, %v1568
  %vm1595 = vcmp.eq.f32.partialorder %v1594, 8.507059e+37
  %v1596 = vand.u32 %v1568, 2147483648
  %v1597 = vor.u32 1.1754944e-38, %v1596
  %v1598 = vsel %vm1595, %v1597, %v1593
  %v1599 = vmul.f32 1.0, %v1598
  %v1600 = vrcp.pop %v1569
  %v1601 = vmul.f32 %v1569, %v1600
  %v1602 = vsub.f32 1.0, %v1601
  %v1603 = vmul.f32 %v1600, %v1602
  %v1604 = vadd.f32 %v1600, %v1603
  %vm1605 = vweird.f32 %v1569
  %vm1606 = vweird.f32 %v1600
  %vm1607 = vmor %vm1605, %vm1606
  %v1608 = vsel %vm1607, %v1600, %v1604
  %v1609 = vand.u32 2147483647, %v1569
  %vm1610 = vcmp.eq.f32.partialorder %v1609, 8.507059e+37
  %v1611 = vand.u32 %v1569, 2147483648
  %v1612 = vor.u32 1.1754944e-38, %v1611
  %v1613 = vsel %vm1610, %v1612, %v1608
  %v1614 = vmul.f32 1.0, %v1613
  %v1615 = vtanh.pop %v1557
  %v1616 = vmul.f32 %v1599, %v1498
  %v1617 = vmul.f32 %v1584, %v1615
  %v1618 = vadd.f32 %v1616, %v1617
  %v1619 = vtanh.pop %v1618
  %v1620 = vmul.f32 %v1614, %v1619
  %v1621 = vpack.c.bf16 %v1620, %v1620
  %1622 = vmatpush.bf16.msra.mxu0 %v866
  %1623 = vmatpush.bf16.msra.mxu0 %v862
  %1624 = vmatpush.bf16.msra.mxu0 %v858
  %1625 = vmatpush.bf16.msra.mxu0 %v854
  %1626 = vmatpush.bf16.msra.mxu0 %v850
  %1627 = vmatpush.bf16.msra.mxu0 %v846
  %1628 = vmatpush.bf16.msra.mxu0 %v842
  %1629 = vmatpush.bf16.msra.mxu0 %v838
  %1630 = vmatmul.bf16.gmra.mxu0 %v1621
  %v1631 = vpop.f32.mrf.mxu0
  %v1632 = vadd.f32 0.0, %v1631
  %v1633 = vpop.f32.mrf.mxu0
  %1634 = vdwg.mxu0
  %1635 = vmatpush.bf16.msra.mxu0 %v867
  %1636 = vmatpush.bf16.msra.mxu0 %v863
  %1637 = vmatpush.bf16.msra.mxu0 %v859
  %1638 = vmatpush.bf16.msra.mxu0 %v855
  %1639 = vmatpush.bf16.msra.mxu0 %v851
  %1640 = vmatpush.bf16.msra.mxu0 %v847
  %1641 = vmatpush.bf16.msra.mxu0 %v843
  %1642 = vmatpush.bf16.msra.mxu0 %v839
  %1643 = vmatmul.bf16.gmra.mxu0 %v1621
  %v1644 = vpop.f32.mrf.mxu0
  %v1645 = vadd.f32 0.0, %v1644
  %v1646 = vpop.f32.mrf.mxu0
  %1647 = vdwg.mxu0
  %1648 = vmatpush.bf16.msra.mxu0 %v868
  %1649 = vmatpush.bf16.msra.mxu0 %v864
  %1650 = vmatpush.bf16.msra.mxu0 %v860
  %1651 = vmatpush.bf16.msra.mxu0 %v856
  %1652 = vmatpush.bf16.msra.mxu0 %v852
  %1653 = vmatpush.bf16.msra.mxu0 %v848
  %1654 = vmatpush.bf16.msra.mxu0 %v844
  %1655 = vmatpush.bf16.msra.mxu0 %v840
  %1656 = vmatmul.bf16.gmra.mxu0 %v1621
  %v1657 = vpop.f32.mrf.mxu0
  %v1658 = vadd.f32 0.0, %v1657
  %v1659 = vpop.f32.mrf.mxu0
  %1660 = vdwg.mxu0
  %1661 = vmatpush.bf16.msra.mxu0 %v869
  %1662 = vmatpush.bf16.msra.mxu0 %v865
  %1663 = vmatpush.bf16.msra.mxu0 %v861
  %1664 = vmatpush.bf16.msra.mxu0 %v857
  %1665 = vmatpush.bf16.msra.mxu0 %v853
  %1666 = vmatpush.bf16.msra.mxu0 %v849
  %1667 = vmatpush.bf16.msra.mxu0 %v845
  %1668 = vmatpush.bf16.msra.mxu0 %v841
  %1669 = vmatmul.bf16.gmra.mxu0 %v1621
  %v1670 = vpop.f32.mrf.mxu0
  %v1671 = vadd.f32 0.0, %v1670
  %v1672 = vpop.f32.mrf.mxu0
  %1673 = vdwg.mxu0
  %v1674 = vadd.f32 %v619, %v1632
  %v1675 = vadd.f32 %v648, %v1645
  %v1676 = vadd.f32 %v677, %v1658
  %v1677 = vadd.f32 %v706, %v1671
  %v1678 = vxor.u32 %v1674, 2147483648
  %v1679 = vxor.u32 %v1675, 2147483648
  %v1680 = vxor.u32 %v1676, 2147483648
  %v1681 = vmul.f32 %v1678, 1.442695
  %v1682 = vpow.pop %v1681
  %v1683 = vmul.f32 %v1679, 1.442695
  %v1684 = vpow.pop %v1683
  %v1685 = vmul.f32 %v1680, 1.442695
  %v1686 = vpow.pop %v1685
  %v1687 = vadd.f32 %v1682, 1.0
  %v1688 = vadd.f32 %v1684, 1.0
  %v1689 = vadd.f32 %v1686, 1.0
  %v1690 = vrcp.pop %v1687
  %v1691 = vmul.f32 %v1687, %v1690
  %v1692 = vsub.f32 1.0, %v1691
  %v1693 = vmul.f32 %v1690, %v1692
  %v1694 = vadd.f32 %v1690, %v1693
  %vm1695 = vweird.f32 %v1687
  %vm1696 = vweird.f32 %v1690
  %vm1697 = vmor %vm1695, %vm1696
  %v1698 = vsel %vm1697, %v1690, %v1694
  %v1699 = vand.u32 2147483647, %v1687
  %vm1700 = vcmp.eq.f32.partialorder %v1699, 8.507059e+37
  %v1701 = vand.u32 %v1687, 2147483648
  %v1702 = vor.u32 1.1754944e-38, %v1701
  %v1703 = vsel %vm1700, %v1702, %v1698
  %v1704 = vmul.f32 1.0, %v1703
  %v1705 = vrcp.pop %v1688
  %v1706 = vmul.f32 %v1688, %v1705
  %v1707 = vsub.f32 1.0, %v1706
  %v1708 = vmul.f32 %v1705, %v1707
  %v1709 = vadd.f32 %v1705, %v1708
  %vm1710 = vweird.f32 %v1688
  %vm1711 = vweird.f32 %v1705
  %vm1712 = vmor %vm1710, %vm1711
  %v1713 = vsel %vm1712, %v1705, %v1709
  %v1714 = vand.u32 2147483647, %v1688
  %vm1715 = vcmp.eq.f32.partialorder %v1714, 8.507059e+37
  %v1716 = vand.u32 %v1688, 2147483648
  %v1717 = vor.u32 1.1754944e-38, %v1716
  %v1718 = vsel %vm1715, %v1717, %v1713
  %v1719 = vmul.f32 1.0, %v1718
  %v1720 = vrcp.pop %v1689
  %v1721 = vmul.f32 %v1689, %v1720
  %v1722 = vsub.f32 1.0, %v1721
  %v1723 = vmul.f32 %v1720, %v1722
  %v1724 = vadd.f32 %v1720, %v1723
  %vm1725 = vweird.f32 %v1689
  %vm1726 = vweird.f32 %v1720
  %vm1727 = vmor %vm1725, %vm1726
  %v1728 = vsel %vm1727, %v1720, %v1724
  %v1729 = vand.u32 2147483647, %v1689
  %vm1730 = vcmp.eq.f32.partialorder %v1729, 8.507059e+37
  %v1731 = vand.u32 %v1689, 2147483648
  %v1732 = vor.u32 1.1754944e-38, %v1731
  %v1733 = vsel %vm1730, %v1732, %v1728
  %v1734 = vmul.f32 1.0, %v1733
  %v1735 = vtanh.pop %v1677
  %v1736 = vmul.f32 %v1719, %v1618
  %v1737 = vmul.f32 %v1704, %v1735
  %v1738 = vadd.f32 %v1736, %v1737
  %v1739 = vtanh.pop %v1738
  %v1740 = vmul.f32 %v1734, %v1739
  %v1741 = vpack.c.bf16 %v1740, %v1740
  %1742 = vmatpush.bf16.msra.mxu0 %v866
  %1743 = vmatpush.bf16.msra.mxu0 %v862
  %1744 = vmatpush.bf16.msra.mxu0 %v858
  %1745 = vmatpush.bf16.msra.mxu0 %v854
  %1746 = vmatpush.bf16.msra.mxu0 %v850
  %1747 = vmatpush.bf16.msra.mxu0 %v846
  %1748 = vmatpush.bf16.msra.mxu0 %v842
  %1749 = vmatpush.bf16.msra.mxu0 %v838
  %1750 = vmatmul.bf16.gmra.mxu0 %v1741
  %v1751 = vpop.f32.mrf.mxu0
  %v1752 = vadd.f32 0.0, %v1751
  %v1753 = vpop.f32.mrf.mxu0
  %1754 = vdwg.mxu0
  %1755 = vmatpush.bf16.msra.mxu0 %v867
  %1756 = vmatpush.bf16.msra.mxu0 %v863
  %1757 = vmatpush.bf16.msra.mxu0 %v859
  %1758 = vmatpush.bf16.msra.mxu0 %v855
  %1759 = vmatpush.bf16.msra.mxu0 %v851
  %1760 = vmatpush.bf16.msra.mxu0 %v847
  %1761 = vmatpush.bf16.msra.mxu0 %v843
  %1762 = vmatpush.bf16.msra.mxu0 %v839
  %1763 = vmatmul.bf16.gmra.mxu0 %v1741
  %v1764 = vpop.f32.mrf.mxu0
  %v1765 = vadd.f32 0.0, %v1764
  %v1766 = vpop.f32.mrf.mxu0
  %1767 = vdwg.mxu0
  %1768 = vmatpush.bf16.msra.mxu0 %v868
  %1769 = vmatpush.bf16.msra.mxu0 %v864
  %1770 = vmatpush.bf16.msra.mxu0 %v860
  %1771 = vmatpush.bf16.msra.mxu0 %v856
  %1772 = vmatpush.bf16.msra.mxu0 %v852
  %1773 = vmatpush.bf16.msra.mxu0 %v848
  %1774 = vmatpush.bf16.msra.mxu0 %v844
  %1775 = vmatpush.bf16.msra.mxu0 %v840
  %1776 = vmatmul.bf16.gmra.mxu0 %v1741
  %v1777 = vpop.f32.mrf.mxu0
  %v1778 = vadd.f32 0.0, %v1777
  %v1779 = vpop.f32.mrf.mxu0
  %1780 = vdwg.mxu0
  %1781 = vmatpush.bf16.msra.mxu0 %v869
  %1782 = vmatpush.bf16.msra.mxu0 %v865
  %1783 = vmatpush.bf16.msra.mxu0 %v861
  %1784 = vmatpush.bf16.msra.mxu0 %v857
  %1785 = vmatpush.bf16.msra.mxu0 %v853
  %1786 = vmatpush.bf16.msra.mxu0 %v849
  %1787 = vmatpush.bf16.msra.mxu0 %v845
  %1788 = vmatpush.bf16.msra.mxu0 %v841
  %1789 = vmatmul.bf16.gmra.mxu0 %v1741
  %v1790 = vpop.f32.mrf.mxu0
  %v1791 = vadd.f32 0.0, %v1790
  %v1792 = vpop.f32.mrf.mxu0
  %1793 = vdwg.mxu0
  %v1794 = vadd.f32 %v621, %v1752
  %v1795 = vadd.f32 %v650, %v1765
  %v1796 = vadd.f32 %v679, %v1778
  %v1797 = vadd.f32 %v708, %v1791
  %v1798 = vxor.u32 %v1794, 2147483648
  %v1799 = vxor.u32 %v1795, 2147483648
  %v1800 = vxor.u32 %v1796, 2147483648
  %v1801 = vmul.f32 %v1798, 1.442695
  %v1802 = vpow.pop %v1801
  %v1803 = vmul.f32 %v1799, 1.442695
  %v1804 = vpow.pop %v1803
  %v1805 = vmul.f32 %v1800, 1.442695
  %v1806 = vpow.pop %v1805
  %v1807 = vadd.f32 %v1802, 1.0
  %v1808 = vadd.f32 %v1804, 1.0
  %v1809 = vadd.f32 %v1806, 1.0
  %v1810 = vrcp.pop %v1807
  %v1811 = vmul.f32 %v1807, %v1810
  %v1812 = vsub.f32 1.0, %v1811
  %v1813 = vmul.f32 %v1810, %v1812
  %v1814 = vadd.f32 %v1810, %v1813
  %vm1815 = vweird.f32 %v1807
  %vm1816 = vweird.f32 %v1810
  %vm1817 = vmor %vm1815, %vm1816
  %v1818 = vsel %vm1817, %v1810, %v1814
  %v1819 = vand.u32 2147483647, %v1807
  %vm1820 = vcmp.eq.f32.partialorder %v1819, 8.507059e+37
  %v1821 = vand.u32 %v1807, 2147483648
  %v1822 = vor.u32 1.1754944e-38, %v1821
  %v1823 = vsel %vm1820, %v1822, %v1818
  %v1824 = vmul.f32 1.0, %v1823
  %v1825 = vrcp.pop %v1808
  %v1826 = vmul.f32 %v1808, %v1825
  %v1827 = vsub.f32 1.0, %v1826
  %v1828 = vmul.f32 %v1825, %v1827
  %v1829 = vadd.f32 %v1825, %v1828
  %vm1830 = vweird.f32 %v1808
  %vm1831 = vweird.f32 %v1825
  %vm1832 = vmor %vm1830, %vm1831
  %v1833 = vsel %vm1832, %v1825, %v1829
  %v1834 = vand.u32 2147483647, %v1808
  %vm1835 = vcmp.eq.f32.partialorder %v1834, 8.507059e+37
  %v1836 = vand.u32 %v1808, 2147483648
  %v1837 = vor.u32 1.1754944e-38, %v1836
  %v1838 = vsel %vm1835, %v1837, %v1833
  %v1839 = vmul.f32 1.0, %v1838
  %v1840 = vrcp.pop %v1809
  %v1841 = vmul.f32 %v1809, %v1840
  %v1842 = vsub.f32 1.0, %v1841
  %v1843 = vmul.f32 %v1840, %v1842
  %v1844 = vadd.f32 %v1840, %v1843
  %vm1845 = vweird.f32 %v1809
  %vm1846 = vweird.f32 %v1840
  %vm1847 = vmor %vm1845, %vm1846
  %v1848 = vsel %vm1847, %v1840, %v1844
  %v1849 = vand.u32 2147483647, %v1809
  %vm1850 = vcmp.eq.f32.partialorder %v1849, 8.507059e+37
  %v1851 = vand.u32 %v1809, 2147483648
  %v1852 = vor.u32 1.1754944e-38, %v1851
  %v1853 = vsel %vm1850, %v1852, %v1848
  %v1854 = vmul.f32 1.0, %v1853
  %v1855 = vtanh.pop %v1797
  %v1856 = vmul.f32 %v1839, %v1738
  %v1857 = vmul.f32 %v1824, %v1855
  %v1858 = vadd.f32 %v1856, %v1857
  %v1859 = vtanh.pop %v1858
  %v1860 = vmul.f32 %v1854, %v1859
  %v1861 = vpack.c.bf16 %v500, %v500
  %v1862 = vpack.c.bf16 %v1860, %v1860
  %v1863 = vld [vmem:[%s7] sm:$0xf]
  %v1864 = vld [vmem:[%s7 + $0x4] sm:$0xf]
  %v1865 = vld [vmem:[%s7 + $0x8] sm:$0xf]
  %v1866 = vld [vmem:[%s7 + $0xc] sm:$0xf]
  %v1867 = vld [vmem:[%s7 + $0x10] sm:$0xf]
  %v1868 = vld [vmem:[%s7 + $0x14] sm:$0xf]
  %v1869 = vld [vmem:[%s7 + $0x18] sm:$0xf]
  %v1870 = vld [vmem:[%s7 + $0x1c] sm:$0xf]
  %v1871 = vld [vmem:[%s7 + $0x20] sm:$0xf]
  %v1872 = vld [vmem:[%s7 + $0x24] sm:$0xf]
  %v1873 = vld [vmem:[%s7 + $0x28] sm:$0xf]
  %v1874 = vld [vmem:[%s7 + $0x2c] sm:$0xf]
  %v1875 = vld [vmem:[%s7 + $0x30] sm:$0xf]
  %v1876 = vld [vmem:[%s7 + $0x34] sm:$0xf]
  %v1877 = vld [vmem:[%s7 + $0x38] sm:$0xf]
  %v1878 = vld [vmem:[%s7 + $0x3c] sm:$0xf]
  %v1879 = vld [vmem:[%s7 + $0x40] sm:$0xf]
  %v1880 = vld [vmem:[%s7 + $0x44] sm:$0xf]
  %v1881 = vld [vmem:[%s7 + $0x48] sm:$0xf]
  %v1882 = vld [vmem:[%s7 + $0x4c] sm:$0xf]
  %v1883 = vld [vmem:[%s7 + $0x50] sm:$0xf]
  %v1884 = vld [vmem:[%s7 + $0x54] sm:$0xf]
  %v1885 = vld [vmem:[%s7 + $0x58] sm:$0xf]
  %v1886 = vld [vmem:[%s7 + $0x5c] sm:$0xf]
  %v1887 = vld [vmem:[%s7 + $0x60] sm:$0xf]
  %v1888 = vld [vmem:[%s7 + $0x64] sm:$0xf]
  %v1889 = vld [vmem:[%s7 + $0x68] sm:$0xf]
  %v1890 = vld [vmem:[%s7 + $0x6c] sm:$0xf]
  %v1891 = vld [vmem:[%s7 + $0x70] sm:$0xf]
  %v1892 = vld [vmem:[%s7 + $0x74] sm:$0xf]
  %v1893 = vld [vmem:[%s7 + $0x78] sm:$0xf]
  %v1894 = vld [vmem:[%s7 + $0x7c] sm:$0xf]
  %v1895 = vld [vmem:[%s8] sm:$0x1]
  %v1897 = vperm.slane %v1895, 0
  %v1931 = vunpack.c.l.b16 %v1863
  %v1932 = vunpack.c.l.b16 %v1864
  %v1933 = vunpack.c.l.b16 %v1865
  %v1934 = vunpack.c.l.b16 %v1866
  %v1935 = vunpack.c.l.b16 %v1867
  %v1936 = vunpack.c.l.b16 %v1868
  %v1937 = vunpack.c.l.b16 %v1869
  %v1938 = vunpack.c.l.b16 %v1870
  %v1939 = vunpack.c.l.b16 %v1871
  %v1940 = vunpack.c.l.b16 %v1872
  %v1941 = vunpack.c.l.b16 %v1873
  %v1942 = vunpack.c.l.b16 %v1874
  %v1943 = vunpack.c.l.b16 %v1875
  %v1944 = vunpack.c.l.b16 %v1876
  %v1945 = vunpack.c.l.b16 %v1877
  %v1946 = vunpack.c.l.b16 %v1878
  %v1947 = vunpack.c.l.b16 %v1879
  %v1948 = vunpack.c.l.b16 %v1880
  %v1949 = vunpack.c.l.b16 %v1881
  %v1950 = vunpack.c.l.b16 %v1882
  %v1951 = vunpack.c.l.b16 %v1883
  %v1952 = vunpack.c.l.b16 %v1884
  %v1953 = vunpack.c.l.b16 %v1885
  %v1954 = vunpack.c.l.b16 %v1886
  %v1955 = vunpack.c.l.b16 %v1887
  %v1956 = vunpack.c.l.b16 %v1888
  %v1957 = vunpack.c.l.b16 %v1889
  %v1958 = vunpack.c.l.b16 %v1890
  %v1959 = vunpack.c.l.b16 %v1891
  %v1960 = vunpack.c.l.b16 %v1892
  %v1961 = vunpack.c.l.b16 %v1893
  %v1962 = vunpack.c.l.b16 %v1894
  %v1963 = vpack.c.b16 %v1932, %v1931
  %v1964 = vpack.c.b16 %v1934, %v1933
  %v1965 = vpack.c.b16 %v1936, %v1935
  %v1966 = vpack.c.b16 %v1938, %v1937
  %v1967 = vpack.c.b16 %v1940, %v1939
  %v1968 = vpack.c.b16 %v1942, %v1941
  %v1969 = vpack.c.b16 %v1944, %v1943
  %v1970 = vpack.c.b16 %v1946, %v1945
  %v1971 = vpack.c.b16 %v1948, %v1947
  %v1972 = vpack.c.b16 %v1950, %v1949
  %v1973 = vpack.c.b16 %v1952, %v1951
  %v1974 = vpack.c.b16 %v1954, %v1953
  %v1975 = vpack.c.b16 %v1956, %v1955
  %v1976 = vpack.c.b16 %v1958, %v1957
  %v1977 = vpack.c.b16 %v1960, %v1959
  %v1978 = vpack.c.b16 %v1962, %v1961
  %1995 = vmatpush.bf16.msra.mxu0 %v1970
  %1996 = vmatpush.bf16.msra.mxu0 %v1969
  %1997 = vmatpush.bf16.msra.mxu0 %v1968
  %1998 = vmatpush.bf16.msra.mxu0 %v1967
  %1999 = vmatpush.bf16.msra.mxu0 %v1966
  %2000 = vmatpush.bf16.msra.mxu0 %v1965
  %2001 = vmatpush.bf16.msra.mxu0 %v1964
  %2002 = vmatpush.bf16.msra.mxu0 %v1963
  %2003 = vmatmul.bf16.gmra.mxu0 %v1861
  %v2004 = vpop.f32.mrf.mxu0
  %v2005 = vadd.f32 %v1897, %v2004
  %v2006 = vpop.f32.mrf.mxu0
  %2007 = vdwg.mxu0
  %2008 = vmatpush.bf16.msra.mxu0 %v1978
  %2009 = vmatpush.bf16.msra.mxu0 %v1977
  %2010 = vmatpush.bf16.msra.mxu0 %v1976
  %2011 = vmatpush.bf16.msra.mxu0 %v1975
  %2012 = vmatpush.bf16.msra.mxu0 %v1974
  %2013 = vmatpush.bf16.msra.mxu0 %v1973
  %2014 = vmatpush.bf16.msra.mxu0 %v1972
  %2015 = vmatpush.bf16.msra.mxu0 %v1971
  %2016 = vmatmul.bf16.gmra.mxu0 %v1862
  %v2017 = vpop.f32.mrf.mxu0
  %v2018 = vadd.f32 %v2005, %v2017
  %v2019 = vpop.f32.mrf.mxu0
  %2020 = vdwg.mxu0
  %v2021 = vmax.f32 %v2018, 0.0
  %v2022 = vpack.c.bf16 %v2021, %v2021
  %v2023 = vld [vmem:[%s9] sm:$0xff]
  %v2024 = vld [vmem:[%s9 + $0x8] sm:$0xff]
  %v2025 = vld [vmem:[%s9 + $0x10] sm:$0xff]
  %v2026 = vld [vmem:[%s9 + $0x18] sm:$0xff]
  %v2027 = vld [vmem:[%s9 + $0x20] sm:$0xff]
  %v2028 = vld [vmem:[%s9 + $0x28] sm:$0xff]
  %v2029 = vld [vmem:[%s9 + $0x30] sm:$0xff]
  %v2030 = vld [vmem:[%s9 + $0x38] sm:$0xff]
  %v2031 = vld [vmem:[%s9 + $0x40] sm:$0xff]
  %v2032 = vld [vmem:[%s9 + $0x48] sm:$0xff]
  %v2033 = vld [vmem:[%s9 + $0x50] sm:$0xff]
  %v2034 = vld [vmem:[%s9 + $0x58] sm:$0xff]
  %v2035 = vld [vmem:[%s9 + $0x60] sm:$0xff]
  %v2036 = vld [vmem:[%s9 + $0x68] sm:$0xff]
  %v2037 = vld [vmem:[%s9 + $0x70] sm:$0xff]
  %v2038 = vld [vmem:[%s9 + $0x78] sm:$0xff]
  %v2039 = vld [vmem:[%s10] sm:$0x3]
  %v2041 = vperm.slane %v2039, 0
  %v2042 = vperm.slane %v2039, 1
  %v2061 = vunpack.c.l.b16 %v2023
  %v2062 = vunpack.c.h.b16 %v2023
  %v2063 = vunpack.c.l.b16 %v2024
  %v2064 = vunpack.c.h.b16 %v2024
  %v2065 = vunpack.c.l.b16 %v2025
  %v2066 = vunpack.c.h.b16 %v2025
  %v2067 = vunpack.c.l.b16 %v2026
  %v2068 = vunpack.c.h.b16 %v2026
  %v2069 = vunpack.c.l.b16 %v2027
  %v2070 = vunpack.c.h.b16 %v2027
  %v2071 = vunpack.c.l.b16 %v2028
  %v2072 = vunpack.c.h.b16 %v2028
  %v2073 = vunpack.c.l.b16 %v2029
  %v2074 = vunpack.c.h.b16 %v2029
  %v2075 = vunpack.c.l.b16 %v2030
  %v2076 = vunpack.c.h.b16 %v2030
  %v2077 = vunpack.c.l.b16 %v2031
  %v2078 = vunpack.c.h.b16 %v2031
  %v2079 = vunpack.c.l.b16 %v2032
  %v2080 = vunpack.c.h.b16 %v2032
  %v2081 = vunpack.c.l.b16 %v2033
  %v2082 = vunpack.c.h.b16 %v2033
  %v2083 = vunpack.c.l.b16 %v2034
  %v2084 = vunpack.c.h.b16 %v2034
  %v2085 = vunpack.c.l.b16 %v2035
  %v2086 = vunpack.c.h.b16 %v2035
  %v2087 = vunpack.c.l.b16 %v2036
  %v2088 = vunpack.c.h.b16 %v2036
  %v2089 = vunpack.c.l.b16 %v2037
  %v2090 = vunpack.c.h.b16 %v2037
  %v2091 = vunpack.c.l.b16 %v2038
  %v2092 = vunpack.c.h.b16 %v2038
  %v2093 = vpack.c.b16 %v2063, %v2061
  %v2094 = vpack.c.b16 %v2064, %v2062
  %v2095 = vpack.c.b16 %v2067, %v2065
  %v2096 = vpack.c.b16 %v2068, %v2066
  %v2097 = vpack.c.b16 %v2071, %v2069
  %v2098 = vpack.c.b16 %v2072, %v2070
  %v2099 = vpack.c.b16 %v2075, %v2073
  %v2100 = vpack.c.b16 %v2076, %v2074
  %v2101 = vpack.c.b16 %v2079, %v2077
  %v2102 = vpack.c.b16 %v2080, %v2078
  %v2103 = vpack.c.b16 %v2083, %v2081
  %v2104 = vpack.c.b16 %v2084, %v2082
  %v2105 = vpack.c.b16 %v2087, %v2085
  %v2106 = vpack.c.b16 %v2088, %v2086
  %v2107 = vpack.c.b16 %v2091, %v2089
  %v2108 = vpack.c.b16 %v2092, %v2090
  %2125 = vmatpush.bf16.msra.mxu0 %v2107
  %2126 = vmatpush.bf16.msra.mxu0 %v2105
  %2127 = vmatpush.bf16.msra.mxu0 %v2103
  %2128 = vmatpush.bf16.msra.mxu0 %v2101
  %2129 = vmatpush.bf16.msra.mxu0 %v2099
  %2130 = vmatpush.bf16.msra.mxu0 %v2097
  %2131 = vmatpush.bf16.msra.mxu0 %v2095
  %2132 = vmatpush.bf16.msra.mxu0 %v2093
  %2133 = vmatmul.bf16.gmra.mxu0 %v2022
  %v2134 = vpop.f32.mrf.mxu0
  %v2135 = vadd.f32 %v2041, %v2134
  %v2136 = vpop.f32.mrf.mxu0
  %2137 = vdwg.mxu0
  %2138 = vmatpush.bf16.msra.mxu0 %v2108
  %2139 = vmatpush.bf16.msra.mxu0 %v2106
  %2140 = vmatpush.bf16.msra.mxu0 %v2104
  %2141 = vmatpush.bf16.msra.mxu0 %v2102
  %2142 = vmatpush.bf16.msra.mxu0 %v2100
  %2143 = vmatpush.bf16.msra.mxu0 %v2098
  %2144 = vmatpush.bf16.msra.mxu0 %v2096
  %2145 = vmatpush.bf16.msra.mxu0 %v2094
  %2146 = vmatmul.bf16.gmra.mxu0 %v2022
  %v2147 = vpop.f32.mrf.mxu0
  %v2148 = vadd.f32 %v2042, %v2147
  %v2149 = vpop.f32.mrf.mxu0
  %2150 = vdwg.mxu0
  %v2151 = vlaneseq
  %v2152 = vshrl.u32 %v2151, 7
  %vm2153 = vcmp.lt.s32.totalorder %v2152, 2
  %v2154 = vsel %vm2153, %v2135, -1e+30
  %v2155 = vsel %vm2153, %v2148, -1e+30
  %v2156 = vrot.slane %v2154, 4
  %v2157 = vmax.f32 %v2154, %v2156
  %v2158 = vrot.slane %v2157, 2
  %v2159 = vmax.f32 %v2157, %v2158
  %v2160 = vrot.slane %v2159, 1
  %v2161 = vmax.f32 %v2159, %v2160
  %v2162 = vrot.slane %v2155, 4
  %v2163 = vmax.f32 %v2155, %v2162
  %v2164 = vrot.slane %v2163, 2
  %v2165 = vmax.f32 %v2163, %v2164
  %v2166 = vrot.slane %v2165, 1
  %v2167 = vmax.f32 %v2165, %v2166
  %v2168 = vsub.f32 %v2154, %v2161
  %v2169 = vsub.f32 %v2155, %v2167
  %v2170 = vmul.f32 %v2168, 1.442695
  %v2171 = vpow.pop %v2170
  %v2172 = vmul.f32 %v2169, 1.442695
  %v2173 = vpow.pop %v2172
  %v2174 = vrot.slane %v2171, 4
  %v2175 = vadd.f32 %v2171, %v2174
  %v2176 = vrot.slane %v2175, 2
  %v2177 = vadd.f32 %v2175, %v2176
  %v2178 = vrot.slane %v2177, 1
  %v2179 = vadd.f32 %v2177, %v2178
  %v2180 = vrot.slane %v2173, 4
  %v2181 = vadd.f32 %v2173, %v2180
  %v2182 = vrot.slane %v2181, 2
  %v2183 = vadd.f32 %v2181, %v2182
  %v2184 = vrot.slane %v2183, 1
  %v2185 = vadd.f32 %v2183, %v2184
  %v2186 = vrcp.pop %v2179
  %v2187 = vrcp.pop %v2185
  %v2188 = vmul.f32 %v2171, %v2186
  %v2189 = vmul.f32 %v2173, %v2187
  %2190 = vst [vmem:[%s11] sm:$0xff] %v2188
  %2191 = vst [vmem:[%s11 + $0x8] sm:$0xff] %v2189
  // Predicated region
  $region46: #{concat_net_forward.1} parent=0 // pred_check
    _
  $region47: #{concat_net_forward.1} parent=0 // pred_check_branch
    %2193 = sbr.rel (0) target = $region49
  $region48: #{concat_net_forward.1} parent=0 // pred_region
    _
  $region49: #{concat_net_forward.1} parent=0 // pred_fallthru
    _
  // Predicated region
  $region50: #{concat_net_forward.1} parent=0 // pred_check
    _
  $region51: #{concat_net_forward.1} parent=0 // pred_check_branch
    %2195 = sbr.rel (0) target = $region53
  $region52: #{concat_net_forward.1} parent=0 // pred_region
    _
  $region53: #{concat_net_forward.1} parent=0 // pred_fallthru
    _

</llo_original>
